<compile_context>
chip_gen: v7x
topology: tpu7x:2x2x1
jax: 0.10.0
libtpu: 0.0.40
codegen_flags: <defaults>
</compile_context>

<pallas_src>
import jax
import jax.numpy as jnp
from jax.experimental import pallas as pl
from jax.experimental.pallas import tpu as pltpu


# ----------------------------------------------------------------------------
# Kernels
# ----------------------------------------------------------------------------

def _pos_emb_kernel_split(pos_ref, freq_ref, out_ref):
    """Fast path: H % 128 == 0, both half-row stores are lane-aligned."""
    # pos_ref:  (TILE_S, 1)    float32
    # freq_ref: (1, H)         float32
    # out_ref:  (TILE_S, 2*H)  out dtype
    H = freq_ref.shape[1]
    sinusoid = pos_ref[...] * freq_ref[...]          # outer product via broadcast
    out_ref[:, :H] = jnp.sin(sinusoid).astype(out_ref.dtype)
    out_ref[:, H:] = jnp.cos(sinusoid).astype(out_ref.dtype)


def _pos_emb_kernel_concat(pos_ref, freq_ref, out_ref):
    """General path: build the full row in vregs, issue one full-width store
    (only the trailing partial vreg is masked).  Used when H % 128 != 0."""
    sinusoid = pos_ref[...] * freq_ref[...]
    row = jnp.concatenate([jnp.sin(sinusoid), jnp.cos(sinusoid)], axis=-1)
    out_ref[...] = row.astype(out_ref.dtype)
    # TODO(synk): for demb < 128, folding k rows into one (k*demb)-lane output
    # row would make the stores fully lane-dense; those sizes currently route
    # to the XLA fallback in auto mode, so the fold is not implemented here.


# ----------------------------------------------------------------------------
# Tiling helpers
# ----------------------------------------------------------------------------

def _vmem_capacity_bytes():
    try:
        cap = int(pltpu.get_tpu_info().vmem_capacity_bytes)
        if cap > 0:
            return cap
    except Exception:
        pass
    return 64 * 1024 * 1024  # conservative: v7x per-TensorCore VMEM


def _choose_tile_s(S, demb, out_itemsize, vmem_cap):
    """Pick a sequence tile:
       - rows are a multiple of the output dtype's sublane packing,
       - single output block <= vmem_cap / 8 (double-buffered out <= 1/4 VMEM,
         leaving headroom for the pos double-buffer, resident freq and
         compiler scratch),
       - capped at 1024 rows (mem-bound roofline plateaus there),
       - at least 2 grid steps whenever S allows (v7x megacore sharding)."""
    packing = 8 * max(1, 4 // max(1, out_itemsize))   # f32:8, bf16:16, int8:32
    block_budget = max(1, vmem_cap // 8)
    bytes_per_row = max(1, demb * out_itemsize)
    max_rows = max(packing, block_budget // bytes_per_row)
    cap = min(1024, max_rows)
    cap = max(packing, (cap // packing) * packing)

    if S <= cap:
        # Prefer 2 grid steps so both v7x TensorCores get work.
        half = -(-S // 2)                              # ceil(S / 2)
        half = -(-half // packing) * packing           # round up to packing
        if half < S:
            return half
        return S       # full extent: always a legal block dim
    return cap


# ----------------------------------------------------------------------------
# Wrapper
# ----------------------------------------------------------------------------

# Below this many output elements, XLA fusion beats pallas_call launch overhead.
_SMALL_PROBLEM_ELEMS = 1 << 17


def _positional_embedding_pallas(pos_seq, inv_freq, out_dtype):
    S = pos_seq.shape[0]
    H = inv_freq.shape[0]
    demb = 2 * H

    pos2d = pos_seq.reshape(S, 1).astype(jnp.float32)
    freq2d = inv_freq.reshape(1, H).astype(jnp.float32)

    itemsize = jnp.dtype(out_dtype).itemsize
    vmem_cap = _vmem_capacity_bytes()
    tile_s = _choose_tile_s(S, demb, itemsize, vmem_cap)
    grid = (pl.cdiv(S, tile_s),)

    kernel = _pos_emb_kernel_split if (H % 128 == 0) else _pos_emb_kernel_concat

    cost = pl.CostEstimate(
        flops=S * H,                               # broadcast multiplies
        transcendentals=S * demb,                  # one sin + one cos per elem
        bytes_accessed=4 * (S + H) + S * demb * itemsize,
    )

    return pl.pallas_call(
        kernel,
        out_shape=jax.ShapeDtypeStruct((S, demb), out_dtype),
        grid=grid,
        in_specs=[
            pl.BlockSpec((tile_s, 1), lambda i: (i, 0)),   # pos rows for tile
            pl.BlockSpec((1, H), lambda i: (0, 0)),        # inv_freq, resident
        ],
        out_specs=pl.BlockSpec((tile_s, demb), lambda i: (i, 0)),
        compiler_params=pltpu.CompilerParams(
            dimension_semantics=("parallel",),
            vmem_limit_bytes=int(min(vmem_cap // 2, 64 * 1024 * 1024)),
        ),
        cost_estimate=cost,
    )(pos2d, freq2d)


def positional_embedding(pos_seq, inv_freq, bsz=None, out_dtype=jnp.float32,
                         use_pallas=None):
    """pos_seq: (S,) float; inv_freq: (demb//2,) float.

    use_pallas: None -> auto (XLA fallback for tiny problems), True/False force.
    """
    S = pos_seq.shape[0]
    H = inv_freq.shape[0]
    demb = 2 * H

    if use_pallas is None:
        use_pallas = (S * demb) >= _SMALL_PROBLEM_ELEMS

    if use_pallas:
        pos_emb = _positional_embedding_pallas(pos_seq, inv_freq, out_dtype)
    else:
        sinusoid = (pos_seq.astype(jnp.float32)[:, None]
                    * inv_freq.astype(jnp.float32)[None, :])
        pos_emb = jnp.concatenate(
            [jnp.sin(sinusoid), jnp.cos(sinusoid)], axis=-1).astype(out_dtype)

    if bsz is not None:
        # torch .expand(bsz, -1, -1) equivalent: lazy broadcast, no copy forced.
        pos_emb = jnp.broadcast_to(pos_emb[None, :, :], (bsz, S, demb))
    return pos_emb


def make_inv_freq(demb):
    # matches: 1 / 10000 ** (arange(0, demb, 2) / demb)
    return 1.0 / (10000.0 ** (jnp.arange(0.0, demb, 2.0) / demb))


def _reference(pos_seq, inv_freq, bsz=None):
    sinusoid = pos_seq[:, None] * inv_freq[None, :]
    ref = jnp.concatenate([jnp.sin(sinusoid), jnp.cos(sinusoid)], axis=-1)
    if bsz is not None:
        ref = jnp.broadcast_to(ref[None, :, :], (bsz,) + ref.shape)
    return ref


if __name__ == "__main__":
    key = jax.random.PRNGKey(0)
    k1, k2 = jax.random.split(key)

    # --- Case 1: lane-aligned fast path (H % 128 == 0), 2 grid steps --------
    demb_a, seq_a, bsz_a = 256, 192, 2
    pos_a = jnp.sort(jax.random.uniform(k1, (seq_a,), dtype=jnp.float32,
                                        minval=0.0, maxval=100.0))
    inv_freq_a = make_inv_freq(demb_a).astype(jnp.float32)

    out_a = positional_embedding(pos_a, inv_freq_a, bsz=bsz_a, use_pallas=True)
    out_a = jax.block_until_ready(out_a)
    ref_a = _reference(pos_a, inv_freq_a, bsz=bsz_a)
    assert out_a.shape == (bsz_a, seq_a, demb_a)
    assert jnp.allclose(out_a, ref_a, atol=1e-5, rtol=1e-5)

    # --- Case 2: small module-like shapes (seq=8, demb=32), general kernel --
    demb_b, seq_b, bsz_b = 32, 8, 2
    pos_b = jnp.sort(jax.random.uniform(k2, (seq_b,), dtype=jnp.float32,
                                        minval=0.0, maxval=100.0))
    inv_freq_b = make_inv_freq(demb_b).astype(jnp.float32)

    out_b = positional_embedding(pos_b, inv_freq_b, bsz=bsz_b, use_pallas=True)
    out_b = jax.block_until_ready(out_b)
    ref_b = _reference(pos_b, inv_freq_b, bsz=bsz_b)
    assert out_b.shape == (bsz_b, seq_b, demb_b)
    assert jnp.allclose(out_b, ref_b, atol=1e-5, rtol=1e-5)

    # No-batch path through the Pallas kernel.
    out_b2 = jax.block_until_ready(
        positional_embedding(pos_b, inv_freq_b, use_pallas=True))
    assert out_b2.shape == (seq_b, demb_b)
    assert jnp.allclose(out_b2, ref_b[0], atol=1e-5, rtol=1e-5)

    # --- Case 3: auto dispatch (tiny problem -> XLA fallback) ---------------
    out_c = jax.block_until_ready(
        positional_embedding(pos_b, inv_freq_b, bsz=bsz_b))  # use_pallas=None
    assert jnp.allclose(out_c, ref_b, atol=1e-5, rtol=1e-5)

    print("KERNEL_OK")
</pallas_src>

<mosaic_0001>
module attributes {stable_mosaic.version = 11 : i64} {
  func.func @_pos_emb_kernel_split(%arg0: i32, %arg1: memref<96x1xf32, #tpu.memory_space<vmem>>, %arg2: memref<1x128xf32, #tpu.memory_space<vmem>>, %arg3: memref<96x256xf32, #tpu.memory_space<vmem>>) attributes {dimension_semantics = [#tpu.dimension_semantics<parallel>], iteration_bounds = array<i64: 2>, scalar_prefetch = 0 : i64, scratch_operands = 0 : i64, tpu.core_type = #tpu.core_type<tc>, window_params = [{transform_indices = @transform_0, window_bounds = array<i64: 96, 1>}, {pipeline_mode = #tpu.pipeline_mode<synchronous>, transform_indices = @transform_1, window_bounds = array<i64: 1, 128>}, {transform_indices = @transform_2, window_bounds = array<i64: 96, 256>}]} {
    %c0 = arith.constant 0 : index
    %c0_0 = arith.constant 0 : index
    %0 = vector.load %arg1[%c0, %c0_0] : memref<96x1xf32, #tpu.memory_space<vmem>>, vector<96x1xf32>
    %c0_1 = arith.constant 0 : index
    %c0_2 = arith.constant 0 : index
    %1 = vector.load %arg2[%c0_1, %c0_2] : memref<1x128xf32, #tpu.memory_space<vmem>>, vector<1x128xf32>
    %2 = vector.broadcast %0 : vector<96x1xf32> to vector<96x128xf32>
    %3 = vector.broadcast %1 : vector<1x128xf32> to vector<96x128xf32>
    %4 = arith.mulf %2, %3 : vector<96x128xf32>
    %5 = math.sin %4 : vector<96x128xf32>
    %c0_3 = arith.constant 0 : index
    %c0_4 = arith.constant 0 : index
    %6 = vector.load %arg3[%c0_3, %c0_4] : memref<96x256xf32, #tpu.memory_space<vmem>>, vector<96x128xf32>
    tpu.vector_store %arg3[%c0_3, %c0_4], %5 {strides = array<i32>} : memref<96x256xf32, #tpu.memory_space<vmem>>, vector<96x128xf32>,
    %7 = math.cos %4 : vector<96x128xf32>
    %c0_5 = arith.constant 0 : index
    %c128 = arith.constant 128 : index
    %8 = vector.load %arg3[%c0_5, %c128] : memref<96x256xf32, #tpu.memory_space<vmem>>, vector<96x128xf32>
    tpu.vector_store %arg3[%c0_5, %c128], %7 {strides = array<i32>} : memref<96x256xf32, #tpu.memory_space<vmem>>, vector<96x128xf32>,
    return
  }
  func.func @transform_0(%arg0: i32) -> (i32, i32) {
    %c0_i32 = arith.constant 0 : i32
    %c0_i32_0 = arith.constant 0 : i32
    return %arg0, %c0_i32 : i32, i32
  }
  func.func @transform_1(%arg0: i32) -> (i32, i32) {
    %c0_i32 = arith.constant 0 : i32
    %c0_i32_0 = arith.constant 0 : i32
    %c0_i32_1 = arith.constant 0 : i32
    return %c0_i32, %c0_i32_0 : i32, i32
  }
  func.func @transform_2(%arg0: i32) -> (i32, i32) {
    %c0_i32 = arith.constant 0 : i32
    %c0_i32_0 = arith.constant 0 : i32
    return %arg0, %c0_i32 : i32, i32
  }
}

</mosaic_0001>

<llo_original>
// kernel: tpu_custom_call.1
$region0: #{tpu_custom_call.1}
  #allocation0 [shape = 'u32[]', space=smem, size = 0x4, offset = 0x4, fixed_abs, tag = 'smem constant byte address 0x4 - core index']
  #allocation1 [shape = 'u32[144,128]{1,0:T(1,128)}', space=vmem, size = 0x12000, scoped, tag = 'internal scratch']
  %s0 = inlined_call_operand.vmem [shape: f32[192,1], index: 0, kind: input, shape index: {}]
  %s1 = inlined_call_operand.vmem [shape: f32[1,128], index: 1, kind: input, shape index: {}]
  %s2 = inlined_call_operand.hbm [shape: f32[192,256], index: 2, kind: output, shape index: {}]
  %s3 = sld [smem:[#allocation0]]
  $region41: #{tpu_custom_call.1} parent=0
    _
  %s5 = ssub.s32 1, %s3
  %s6 = scalar_select 0, %s5, %s3
  $region1: #{tpu_custom_call.1} parent=0
    #allocation2 [shape = 'u8[196608]{0}', space=vmem, size = 0x30000, scoped, tag = 'output window, operand 0']
    #allocation3 [shape = 's32[2]{0}', space=sflag, size = 0x8, scoped, tag = 'scoped memory for tpu_custom_call.1']
    %7 = vsyncpa [#allocation3], 0
    %s8 = scalar_lea.sflag [#allocation3], 1
    %9 = vsyncpa %s8, 0
    loop: start=0, step=1, limit=4
    $region2: #{tpu_custom_call.1} parent=1 // loop_pre_header
      _
    $region3: #{tpu_custom_call.1} parent=1 // loop_header
      %s11 = sphi 0, %s15
      %p12 = scmp.ge.s32.totalorder %s11, 4
      %s21 = sphi 0, %s23
      %s24 = sphi 0, %s21
      %s25 = sphi 0, %s24
      %s41 = sphi 0, %s25
      %s45 = sphi 0, %s45
      %s47 = sphi 0, %s45
      %s48 = sphi 0, %s47
      %s62 = sphi 0, %s48
      %s68 = sphi 0, %s70
      %s71 = sphi 0, %s68
      %s72 = sphi 0, %s71
      %s88 = sphi 0, %s72
    $region4: #{tpu_custom_call.1} parent=1 // loop_header_branch
      %14 = sbr.rel (%p12) target = $region8
    $region5: #{tpu_custom_call.1} parent=1 // loop_body
      %s16 = ssub.s32 %s11, 1
      %s17 = ssub.s32 %s11, 2
      %s18 = sadd.s32 %s11, 1
      %s19 = ssub.s32 %s11, %s18
      %p20 = scmp.eq.s32.totalorder %s19, 0
      %s22 = sadd.s32 %s21, 1
      %s23 = scalar_select %p20, %s21, %s22
      %p26 = pneg %p20
      %p27 = scmp.eq.s32.totalorder %s11, 1
      %p28 = por %p26, %p27
      %p29 = scmp.ne.s32.totalorder %s21, %s24
      %p30 = scmp.eq.s32.totalorder %s11, 0
      %p31 = por %p29, %p30
      %p32 = scmp.ne.s32.totalorder %s21, %s24
      %p33 = scmp.eq.s32.totalorder %s16, 1
      %p34 = por %p32, %p33
      %p35 = scmp.ne.s32.totalorder %s24, %s25
      %p36 = scmp.eq.s32.totalorder %s16, 0
      %p37 = por %p35, %p36
      %p38 = scmp.ne.s32.totalorder %s24, %s25
      %p39 = scmp.eq.s32.totalorder %s17, 1
      %p40 = por %p38, %p39
      %p42 = scmp.ne.s32.totalorder %s25, %s41
      %p43 = scmp.eq.s32.totalorder %s17, 0
      %p44 = por %p42, %p43
      %s46 = sadd.s32 %s45, 1
      %p49 = scmp.eq.s32.totalorder %s11, 1
      %p50 = scmp.ne.s32.totalorder %s45, %s47
      %p51 = scmp.eq.s32.totalorder %s11, 0
      %p52 = por %p50, %p51
      %p53 = scmp.ne.s32.totalorder %s45, %s47
      %p54 = scmp.eq.s32.totalorder %s16, 1
      %p55 = por %p53, %p54
      %p56 = scmp.ne.s32.totalorder %s47, %s48
      %p57 = scmp.eq.s32.totalorder %s16, 0
      %p58 = por %p56, %p57
      %p59 = scmp.ne.s32.totalorder %s47, %s48
      %p60 = scmp.eq.s32.totalorder %s17, 1
      %p61 = por %p59, %p60
      %p63 = scmp.ne.s32.totalorder %s48, %s62
      %p64 = scmp.eq.s32.totalorder %s17, 0
      %p65 = por %p63, %p64
      %s66 = ssub.s32 %s11, %s18
      %p67 = scmp.eq.s32.totalorder %s66, 0
      %s69 = sadd.s32 %s68, 1
      %s70 = scalar_select %p67, %s68, %s69
      %p73 = pneg %p67
      %p74 = scmp.eq.s32.totalorder %s11, 1
      %p75 = por %p73, %p74
      %p76 = scmp.ne.s32.totalorder %s68, %s71
      %p77 = scmp.eq.s32.totalorder %s11, 0
      %p78 = por %p76, %p77
      %p79 = scmp.ne.s32.totalorder %s68, %s71
      %p80 = scmp.eq.s32.totalorder %s16, 1
      %p81 = por %p79, %p80
      %p82 = scmp.ne.s32.totalorder %s71, %s72
      %p83 = scmp.eq.s32.totalorder %s16, 0
      %p84 = por %p82, %p83
      %p85 = scmp.ne.s32.totalorder %s71, %s72
      %p86 = scmp.eq.s32.totalorder %s17, 1
      %p87 = por %p85, %p86
      %p89 = scmp.ne.s32.totalorder %s72, %s88
      %p90 = scmp.eq.s32.totalorder %s17, 0
      %p91 = por %p89, %p90
      %p92 = scmp.le.s32.totalorder 1, %s11
      %p93 = scmp.lt.s32.totalorder %s11, 3
      %p94 = pnand %p92, %p93
      %p95 = pneg %p94
      // Predicated region
      $region9: #{tpu_custom_call.1} parent=5 // pred_check
        _
      $region10: #{tpu_custom_call.1} parent=5 // pred_check_branch
        %97 = sbr.rel (%p94) target = $region12
      $region11: #{tpu_custom_call.1} parent=5 // pred_region
        %s98 = ssub.s32 %s11, 1
        // Predicated region
        $region13: #{tpu_custom_call.1} parent=11 // pred_check
          %p99 = pneg %p58
        $region14: #{tpu_custom_call.1} parent=11 // pred_check_branch
          %101 = sbr.rel (%p99) target = $region16
        $region15: #{tpu_custom_call.1} parent=11 // pred_region
          _
        $region16: #{tpu_custom_call.1} parent=11 // pred_fallthru
          _
      $region12: #{tpu_custom_call.1} parent=5 // pred_fallthru
        _
      %p102 = scmp.lt.s32.totalorder %s11, 2
      // Predicated region
      $region17: #{tpu_custom_call.1} parent=5 // pred_check
        %p103 = pneg %p102
      $region18: #{tpu_custom_call.1} parent=5 // pred_check_branch
        %105 = sbr.rel (%p103) target = $region20
      $region19: #{tpu_custom_call.1} parent=5 // pred_region
        // Predicated region
        $region21: #{tpu_custom_call.1} parent=19 // pred_check
          %p106 = pneg %p31
        $region22: #{tpu_custom_call.1} parent=19 // pred_check_branch
          %108 = sbr.rel (%p106) target = $region24
        $region23: #{tpu_custom_call.1} parent=19 // pred_region
          %s109 = smul.u32 12, %s11
          %p110 = scmp.lt.s32.totalorder %s109, 23
          %s111 = scalar_select %p110, %s109, 23
          %s112 = smul.addr %s111, 8
          %s113 = scalar_lea.vmem %s0, %s112
          %s114 = smul.u32 12, %s11
        $region24: #{tpu_custom_call.1} parent=19 // pred_fallthru
          _
      $region20: #{tpu_custom_call.1} parent=5 // pred_fallthru
        _
      %p115 = scmp.le.s32.totalorder 1, %s11
      %p116 = scmp.lt.s32.totalorder %s11, 3
      %p117 = pnand %p115, %p116
      %p118 = pneg %p117
      // Predicated region
      $region25: #{tpu_custom_call.1} parent=5 // pred_check
        _
      $region26: #{tpu_custom_call.1} parent=5 // pred_check_branch
        %120 = sbr.rel (%p117) target = $region28
      $region27: #{tpu_custom_call.1} parent=5 // pred_region
        %s121 = ssub.s32 %s11, 1
        %s122 = smul.u32 12, %s16
        %p123 = scmp.lt.s32.totalorder %s122, 23
        %s124 = scalar_select %p123, %s122, 23
        %s125 = smul.addr %s124, 8
        %s126 = scalar_lea.vmem %s0, %s125
        %p127 = pneg %p37
        %p128 = pneg %p34
        %p129 = pneg %p58
        %p130 = pneg %p55
        %p131 = pneg %p84
        %p132 = pneg %p81
        %s133 = sand.u32 %s71, 1
        %s134 = scalar_lea.sflag [#allocation3], %s133
        %s135 = sand.u32 %s71, 1
        %s136 = smul.addr %s135, 192
        %s137 = scalar_lea.vmem [#allocation2], %s136
        %s138 = smul.u32 12, %s16
        %p139 = scmp.lt.s32.totalorder %s138, 23
        %s140 = scalar_select %p139, %s138, 23
        %s141 = smul.addr %s140, 8
        %s142 = scalar_lea.vmem %s0, %s141
        %s143 = smul.u32 12, %s16
        %s144 = smul.u32 12, %s16
        %v145 = vld [vmem:[%s142] sm:$0xff]
        %v146 = vld [vmem:[%s142 + $0x8] sm:$0xff]
        %v147 = vld [vmem:[%s142 + $0x10] sm:$0xff]
        %v148 = vld [vmem:[%s142 + $0x18] sm:$0xff]
        %v149 = vld [vmem:[%s142 + $0x20] sm:$0xff]
        %v150 = vld [vmem:[%s142 + $0x28] sm:$0xff]
        %v151 = vld [vmem:[%s142 + $0x30] sm:$0xff]
        %v152 = vld [vmem:[%s142 + $0x38] sm:$0xff]
        %v153 = vld [vmem:[%s142 + $0x40] sm:$0xff]
        %v154 = vld [vmem:[%s142 + $0x48] sm:$0xff]
        %v155 = vld [vmem:[%s142 + $0x50] sm:$0xff]
        %v156 = vld [vmem:[%s142 + $0x58] sm:$0xff]
        %v157 = vld [vmem:[%s1] sm:$0x1]
        %159 = vset.pattern.permute.xlu0 0
        %160 = vperm.xlu0 %159, %v145
        %v161 = vpop.permute.xlu0 %160
        %164 = vset.pattern.permute.xlu0 0
        %165 = vperm.xlu0 %164, %v146
        %v166 = vpop.permute.xlu0 %165
        %169 = vset.pattern.permute.xlu0 0
        %170 = vperm.xlu0 %169, %v147
        %v171 = vpop.permute.xlu0 %170
        %174 = vset.pattern.permute.xlu0 0
        %175 = vperm.xlu0 %174, %v148
        %v176 = vpop.permute.xlu0 %175
        %179 = vset.pattern.permute.xlu0 0
        %180 = vperm.xlu0 %179, %v149
        %v181 = vpop.permute.xlu0 %180
        %184 = vset.pattern.permute.xlu0 0
        %185 = vperm.xlu0 %184, %v150
        %v186 = vpop.permute.xlu0 %185
        %189 = vset.pattern.permute.xlu0 0
        %190 = vperm.xlu0 %189, %v151
        %v191 = vpop.permute.xlu0 %190
        %194 = vset.pattern.permute.xlu0 0
        %195 = vperm.xlu0 %194, %v152
        %v196 = vpop.permute.xlu0 %195
        %199 = vset.pattern.permute.xlu0 0
        %200 = vperm.xlu0 %199, %v153
        %v201 = vpop.permute.xlu0 %200
        %204 = vset.pattern.permute.xlu0 0
        %205 = vperm.xlu0 %204, %v154
        %v206 = vpop.permute.xlu0 %205
        %209 = vset.pattern.permute.xlu0 0
        %210 = vperm.xlu0 %209, %v155
        %v211 = vpop.permute.xlu0 %210
        %214 = vset.pattern.permute.xlu0 0
        %215 = vperm.xlu0 %214, %v156
        %v216 = vpop.permute.xlu0 %215
        %v219 = vlaneseq
        %v220 = vshrl.u32 %v219, 7
        %v221 = vsub.s32 0, %v220
        %v222 = vrot.slane %v157, %v221
        %v224 = vmul.f32 %v161, %v222
        %v225 = vmul.f32 %v166, %v222
        %v226 = vmul.f32 %v171, %v222
        %v227 = vmul.f32 %v176, %v222
        %v228 = vmul.f32 %v181, %v222
        %v229 = vmul.f32 %v186, %v222
        %v230 = vmul.f32 %v191, %v222
        %v231 = vmul.f32 %v196, %v222
        %v232 = vmul.f32 %v201, %v222
        %v233 = vmul.f32 %v206, %v222
        %v234 = vmul.f32 %v211, %v222
        %v235 = vmul.f32 %v216, %v222
        %v236 = vand.u32 2147483647, %v224
        %vm237 = vcmp.le.f32.partialorder %v236, 0.7853982
        %vm238 = vcmp.lt.s32.totalorder %v224, 0
        %v239 = vand.u32 %v224, 2139095040
        %v240 = vshrl.u32 %v239, 23
        %v241 = vsub.s32 %v240, 127
        %v242 = vand.u32 2147483647, %v224
        %v243 = vand.u32 %v242, 8388607
        %v244 = vor.u32 %v243, 8388608
        %v245 = vsub.s32 0, %v244
        %v246 = vadd.s32 %v241, 1
        %vm247 = vcmp.gt.s32.totalorder %v246, 0
        %v248 = vsel %vm247, %v246, 0
        %v249 = vshrl.u32 %v248, 5
        %v250 = vand.u32 %v248, 31
        %v251 = vsub.s32 32, %v250
        %v252 = vshrl.u32 683565275, %v251
        %v253 = vshll.u32 683565275, %v250
        %v254 = vshrl.u32 2475754826, %v251
        %v255 = vor.u32 %v253, %v254
        %v256 = vshll.u32 2475754826, %v250
        %v257 = vshrl.u32 2131351028, %v251
        %v258 = vor.u32 %v256, %v257
        %v259 = vshll.u32 2131351028, %v250
        %v260 = vshrl.u32 2102212464, %v251
        %v261 = vor.u32 %v259, %v260
        %v262 = vshll.u32 2102212464, %v250
        %v263 = vshrl.u32 920167782, %v251
        %v264 = vor.u32 %v262, %v263
        %v265 = vshll.u32 920167782, %v250
        %v266 = vshrl.u32 1326507024, %v251
        %v267 = vor.u32 %v265, %v266
        %vm268 = vcmp.lt.s32.totalorder %v249, 1
        %vm269 = vcmp.lt.s32.totalorder %v249, 2
        %vm270 = vcmp.lt.s32.totalorder %v249, 3
        %vm271 = vcmp.lt.s32.totalorder %v249, 4
        %v272 = vsel %vm268, %v252, %v255
        %v273 = vsel %vm271, %v261, 2102212464
        %v274 = vsel %vm270, %v258, %v273
        %v275 = vsel %vm269, %v272, %v274
        %v276 = vsel %vm268, %v255, %v258
        %v277 = vsel %vm271, %v264, 920167782
        %v278 = vsel %vm270, %v261, %v277
        %v279 = vsel %vm269, %v276, %v278
        %v280 = vsel %vm268, %v258, %v261
        %v281 = vsel %vm271, %v267, 1326507024
        %v282 = vsel %vm270, %v264, %v281
        %v283 = vsel %vm269, %v280, %v282
        %v284 = vshll.u32 %v244, 8
        %v285 = vmul.u32.u64.compose %v284, %v283
        %v286 = vextract.low.u32 %v285
        %v287 = vextract.high.u32 %v285
        %v288 = vmul.u32.u64.compose %v284, %v279
        %v289 = vextract.low.u32 %v288
        %v290 = vextract.high.u32 %v288
        %v291 = vmul.u32 %v284, %v275
        %v292 = vadd.s32 %v287, %v289
        %vm293 = vc.u32 %v287, %v289
        %v294 = vadd.s32 %v290, 1
        %v295 = vsel %vm293, %v294, %v290
        %v296 = vadd.s32 %v291, %v295
        %v297 = vadd.s32 %v296, 536870912
        %v298 = vshrl.u32 %v297, 30
        %v299 = vshll.u32 %v298, 30
        %v300 = vsub.s32 %v296, %v299
        %vm301 = vcmp.lt.s32.totalorder %v300, 0
        %v302 = vsub.s32 0, %v300
        %v303 = vsel %vm301, %v302, %v300
        %v304 = vclz %v303
        %v305 = vsub.s32 %v304, 2
        %vm306 = vcmp.gt.s32.totalorder 0, %v305
        %v307 = vsel %vm306, 0, %v305
        %v308 = vsub.s32 32, %v307
        %v309 = vshll.u32 %v300, %v307
        %v310 = vshrl.u32 %v292, %v308
        %v311 = vor.u32 %v309, %v310
        %v312 = vsub.s32 4294967266, %v307
        %v313 = vadd.s32 %v312, 127
        %v314 = vshll.u32 %v313, 23
        %v315 = vor.u32 4788187, %v314
        %v316 = vand.u32 2147483647, %v315
        %v318 = vcvt.s32.f32 %v311
        %v319 = vmul.f32 %v318, %v316
        %v320 = vxor.u32 %v319, 2147483648
        %v321 = vsel %vm238, %v320, %v319
        %v322 = vsub.s32 4, %v298
        %v323 = vsel %vm238, %v322, %v298
        %v324 = vsel %vm237, %v224, %v321
        %v325 = vsel %vm237, 0, %v323
        %v326 = vcosq.f32.pop %v324
        %v327 = vsinq.f32.pop %v324
        %vm328 = vweird.f32 %v224
        %v329 = vadd.s32 %v325, 3
        %v330 = vand.u32 %v329, 3
        %vm331 = vcmp.lt.s32.totalorder %v330, 2
        %vm332 = vcmp.eq.s32.totalorder %v330, 0
        %v333 = vxor.u32 %v327, 2147483648
        %v334 = vsel %vm332, %v326, %v333
        %vm335 = vcmp.eq.s32.totalorder %v330, 2
        %v336 = vxor.u32 %v326, 2147483648
        %v337 = vsel %vm335, %v336, %v327
        %v338 = vsel %vm331, %v334, %v337
        %v339 = vsel %vm328, nan, %v338
        %v340 = vand.u32 2147483647, %v225
        %vm341 = vcmp.le.f32.partialorder %v340, 0.7853982
        %vm342 = vcmp.lt.s32.totalorder %v225, 0
        %v343 = vand.u32 %v225, 2139095040
        %v344 = vshrl.u32 %v343, 23
        %v345 = vsub.s32 %v344, 127
        %v346 = vand.u32 2147483647, %v225
        %v347 = vand.u32 %v346, 8388607
        %v348 = vor.u32 %v347, 8388608
        %v349 = vsub.s32 0, %v348
        %v350 = vadd.s32 %v345, 1
        %vm351 = vcmp.gt.s32.totalorder %v350, 0
        %v352 = vsel %vm351, %v350, 0
        %v353 = vshrl.u32 %v352, 5
        %v354 = vand.u32 %v352, 31
        %v355 = vsub.s32 32, %v354
        %v356 = vshrl.u32 683565275, %v355
        %v357 = vshll.u32 683565275, %v354
        %v358 = vshrl.u32 2475754826, %v355
        %v359 = vor.u32 %v357, %v358
        %v360 = vshll.u32 2475754826, %v354
        %v361 = vshrl.u32 2131351028, %v355
        %v362 = vor.u32 %v360, %v361
        %v363 = vshll.u32 2131351028, %v354
        %v364 = vshrl.u32 2102212464, %v355
        %v365 = vor.u32 %v363, %v364
        %v366 = vshll.u32 2102212464, %v354
        %v367 = vshrl.u32 920167782, %v355
        %v368 = vor.u32 %v366, %v367
        %v369 = vshll.u32 920167782, %v354
        %v370 = vshrl.u32 1326507024, %v355
        %v371 = vor.u32 %v369, %v370
        %vm372 = vcmp.lt.s32.totalorder %v353, 1
        %vm373 = vcmp.lt.s32.totalorder %v353, 2
        %vm374 = vcmp.lt.s32.totalorder %v353, 3
        %vm375 = vcmp.lt.s32.totalorder %v353, 4
        %v376 = vsel %vm372, %v356, %v359
        %v377 = vsel %vm375, %v365, 2102212464
        %v378 = vsel %vm374, %v362, %v377
        %v379 = vsel %vm373, %v376, %v378
        %v380 = vsel %vm372, %v359, %v362
        %v381 = vsel %vm375, %v368, 920167782
        %v382 = vsel %vm374, %v365, %v381
        %v383 = vsel %vm373, %v380, %v382
        %v384 = vsel %vm372, %v362, %v365
        %v385 = vsel %vm375, %v371, 1326507024
        %v386 = vsel %vm374, %v368, %v385
        %v387 = vsel %vm373, %v384, %v386
        %v388 = vshll.u32 %v348, 8
        %v389 = vmul.u32.u64.compose %v388, %v387
        %v390 = vextract.low.u32 %v389
        %v391 = vextract.high.u32 %v389
        %v392 = vmul.u32.u64.compose %v388, %v383
        %v393 = vextract.low.u32 %v392
        %v394 = vextract.high.u32 %v392
        %v395 = vmul.u32 %v388, %v379
        %v396 = vadd.s32 %v391, %v393
        %vm397 = vc.u32 %v391, %v393
        %v398 = vadd.s32 %v394, 1
        %v399 = vsel %vm397, %v398, %v394
        %v400 = vadd.s32 %v395, %v399
        %v401 = vadd.s32 %v400, 536870912
        %v402 = vshrl.u32 %v401, 30
        %v403 = vshll.u32 %v402, 30
        %v404 = vsub.s32 %v400, %v403
        %vm405 = vcmp.lt.s32.totalorder %v404, 0
        %v406 = vsub.s32 0, %v404
        %v407 = vsel %vm405, %v406, %v404
        %v408 = vclz %v407
        %v409 = vsub.s32 %v408, 2
        %vm410 = vcmp.gt.s32.totalorder 0, %v409
        %v411 = vsel %vm410, 0, %v409
        %v412 = vsub.s32 32, %v411
        %v413 = vshll.u32 %v404, %v411
        %v414 = vshrl.u32 %v396, %v412
        %v415 = vor.u32 %v413, %v414
        %v416 = vsub.s32 4294967266, %v411
        %v417 = vadd.s32 %v416, 127
        %v418 = vshll.u32 %v417, 23
        %v419 = vor.u32 4788187, %v418
        %v420 = vand.u32 2147483647, %v419
        %v422 = vcvt.s32.f32 %v415
        %v423 = vmul.f32 %v422, %v420
        %v424 = vxor.u32 %v423, 2147483648
        %v425 = vsel %vm342, %v424, %v423
        %v426 = vsub.s32 4, %v402
        %v427 = vsel %vm342, %v426, %v402
        %v428 = vsel %vm341, %v225, %v425
        %v429 = vsel %vm341, 0, %v427
        %v430 = vcosq.f32.pop %v428
        %v431 = vsinq.f32.pop %v428
        %vm432 = vweird.f32 %v225
        %v433 = vadd.s32 %v429, 3
        %v434 = vand.u32 %v433, 3
        %vm435 = vcmp.lt.s32.totalorder %v434, 2
        %vm436 = vcmp.eq.s32.totalorder %v434, 0
        %v437 = vxor.u32 %v431, 2147483648
        %v438 = vsel %vm436, %v430, %v437
        %vm439 = vcmp.eq.s32.totalorder %v434, 2
        %v440 = vxor.u32 %v430, 2147483648
        %v441 = vsel %vm439, %v440, %v431
        %v442 = vsel %vm435, %v438, %v441
        %v443 = vsel %vm432, nan, %v442
        %v444 = vand.u32 2147483647, %v226
        %vm445 = vcmp.le.f32.partialorder %v444, 0.7853982
        %vm446 = vcmp.lt.s32.totalorder %v226, 0
        %v447 = vand.u32 %v226, 2139095040
        %v448 = vshrl.u32 %v447, 23
        %v449 = vsub.s32 %v448, 127
        %v450 = vand.u32 2147483647, %v226
        %v451 = vand.u32 %v450, 8388607
        %v452 = vor.u32 %v451, 8388608
        %v453 = vsub.s32 0, %v452
        %v454 = vadd.s32 %v449, 1
        %vm455 = vcmp.gt.s32.totalorder %v454, 0
        %v456 = vsel %vm455, %v454, 0
        %v457 = vshrl.u32 %v456, 5
        %v458 = vand.u32 %v456, 31
        %v459 = vsub.s32 32, %v458
        %v460 = vshrl.u32 683565275, %v459
        %v461 = vshll.u32 683565275, %v458
        %v462 = vshrl.u32 2475754826, %v459
        %v463 = vor.u32 %v461, %v462
        %v464 = vshll.u32 2475754826, %v458
        %v465 = vshrl.u32 2131351028, %v459
        %v466 = vor.u32 %v464, %v465
        %v467 = vshll.u32 2131351028, %v458
        %v468 = vshrl.u32 2102212464, %v459
        %v469 = vor.u32 %v467, %v468
        %v470 = vshll.u32 2102212464, %v458
        %v471 = vshrl.u32 920167782, %v459
        %v472 = vor.u32 %v470, %v471
        %v473 = vshll.u32 920167782, %v458
        %v474 = vshrl.u32 1326507024, %v459
        %v475 = vor.u32 %v473, %v474
        %vm476 = vcmp.lt.s32.totalorder %v457, 1
        %vm477 = vcmp.lt.s32.totalorder %v457, 2
        %vm478 = vcmp.lt.s32.totalorder %v457, 3
        %vm479 = vcmp.lt.s32.totalorder %v457, 4
        %v480 = vsel %vm476, %v460, %v463
        %v481 = vsel %vm479, %v469, 2102212464
        %v482 = vsel %vm478, %v466, %v481
        %v483 = vsel %vm477, %v480, %v482
        %v484 = vsel %vm476, %v463, %v466
        %v485 = vsel %vm479, %v472, 920167782
        %v486 = vsel %vm478, %v469, %v485
        %v487 = vsel %vm477, %v484, %v486
        %v488 = vsel %vm476, %v466, %v469
        %v489 = vsel %vm479, %v475, 1326507024
        %v490 = vsel %vm478, %v472, %v489
        %v491 = vsel %vm477, %v488, %v490
        %v492 = vshll.u32 %v452, 8
        %v493 = vmul.u32.u64.compose %v492, %v491
        %v494 = vextract.low.u32 %v493
        %v495 = vextract.high.u32 %v493
        %v496 = vmul.u32.u64.compose %v492, %v487
        %v497 = vextract.low.u32 %v496
        %v498 = vextract.high.u32 %v496
        %v499 = vmul.u32 %v492, %v483
        %v500 = vadd.s32 %v495, %v497
        %vm501 = vc.u32 %v495, %v497
        %v502 = vadd.s32 %v498, 1
        %v503 = vsel %vm501, %v502, %v498
        %v504 = vadd.s32 %v499, %v503
        %v505 = vadd.s32 %v504, 536870912
        %v506 = vshrl.u32 %v505, 30
        %v507 = vshll.u32 %v506, 30
        %v508 = vsub.s32 %v504, %v507
        %vm509 = vcmp.lt.s32.totalorder %v508, 0
        %v510 = vsub.s32 0, %v508
        %v511 = vsel %vm509, %v510, %v508
        %v512 = vclz %v511
        %v513 = vsub.s32 %v512, 2
        %vm514 = vcmp.gt.s32.totalorder 0, %v513
        %v515 = vsel %vm514, 0, %v513
        %v516 = vsub.s32 32, %v515
        %v517 = vshll.u32 %v508, %v515
        %v518 = vshrl.u32 %v500, %v516
        %v519 = vor.u32 %v517, %v518
        %v520 = vsub.s32 4294967266, %v515
        %v521 = vadd.s32 %v520, 127
        %v522 = vshll.u32 %v521, 23
        %v523 = vor.u32 4788187, %v522
        %v524 = vand.u32 2147483647, %v523
        %v526 = vcvt.s32.f32 %v519
        %v527 = vmul.f32 %v526, %v524
        %v528 = vxor.u32 %v527, 2147483648
        %v529 = vsel %vm446, %v528, %v527
        %v530 = vsub.s32 4, %v506
        %v531 = vsel %vm446, %v530, %v506
        %v532 = vsel %vm445, %v226, %v529
        %v533 = vsel %vm445, 0, %v531
        %v534 = vcosq.f32.pop %v532
        %v535 = vsinq.f32.pop %v532
        %vm536 = vweird.f32 %v226
        %v537 = vadd.s32 %v533, 3
        %v538 = vand.u32 %v537, 3
        %vm539 = vcmp.lt.s32.totalorder %v538, 2
        %vm540 = vcmp.eq.s32.totalorder %v538, 0
        %v541 = vxor.u32 %v535, 2147483648
        %v542 = vsel %vm540, %v534, %v541
        %vm543 = vcmp.eq.s32.totalorder %v538, 2
        %v544 = vxor.u32 %v534, 2147483648
        %v545 = vsel %vm543, %v544, %v535
        %v546 = vsel %vm539, %v542, %v545
        %v547 = vsel %vm536, nan, %v546
        %v548 = vand.u32 2147483647, %v227
        %vm549 = vcmp.le.f32.partialorder %v548, 0.7853982
        %vm550 = vcmp.lt.s32.totalorder %v227, 0
        %v551 = vand.u32 %v227, 2139095040
        %v552 = vshrl.u32 %v551, 23
        %v553 = vsub.s32 %v552, 127
        %v554 = vand.u32 2147483647, %v227
        %v555 = vand.u32 %v554, 8388607
        %v556 = vor.u32 %v555, 8388608
        %v557 = vsub.s32 0, %v556
        %v558 = vadd.s32 %v553, 1
        %vm559 = vcmp.gt.s32.totalorder %v558, 0
        %v560 = vsel %vm559, %v558, 0
        %v561 = vshrl.u32 %v560, 5
        %v562 = vand.u32 %v560, 31
        %v563 = vsub.s32 32, %v562
        %v564 = vshrl.u32 683565275, %v563
        %v565 = vshll.u32 683565275, %v562
        %v566 = vshrl.u32 2475754826, %v563
        %v567 = vor.u32 %v565, %v566
        %v568 = vshll.u32 2475754826, %v562
        %v569 = vshrl.u32 2131351028, %v563
        %v570 = vor.u32 %v568, %v569
        %v571 = vshll.u32 2131351028, %v562
        %v572 = vshrl.u32 2102212464, %v563
        %v573 = vor.u32 %v571, %v572
        %v574 = vshll.u32 2102212464, %v562
        %v575 = vshrl.u32 920167782, %v563
        %v576 = vor.u32 %v574, %v575
        %v577 = vshll.u32 920167782, %v562
        %v578 = vshrl.u32 1326507024, %v563
        %v579 = vor.u32 %v577, %v578
        %vm580 = vcmp.lt.s32.totalorder %v561, 1
        %vm581 = vcmp.lt.s32.totalorder %v561, 2
        %vm582 = vcmp.lt.s32.totalorder %v561, 3
        %vm583 = vcmp.lt.s32.totalorder %v561, 4
        %v584 = vsel %vm580, %v564, %v567
        %v585 = vsel %vm583, %v573, 2102212464
        %v586 = vsel %vm582, %v570, %v585
        %v587 = vsel %vm581, %v584, %v586
        %v588 = vsel %vm580, %v567, %v570
        %v589 = vsel %vm583, %v576, 920167782
        %v590 = vsel %vm582, %v573, %v589
        %v591 = vsel %vm581, %v588, %v590
        %v592 = vsel %vm580, %v570, %v573
        %v593 = vsel %vm583, %v579, 1326507024
        %v594 = vsel %vm582, %v576, %v593
        %v595 = vsel %vm581, %v592, %v594
        %v596 = vshll.u32 %v556, 8
        %v597 = vmul.u32.u64.compose %v596, %v595
        %v598 = vextract.low.u32 %v597
        %v599 = vextract.high.u32 %v597
        %v600 = vmul.u32.u64.compose %v596, %v591
        %v601 = vextract.low.u32 %v600
        %v602 = vextract.high.u32 %v600
        %v603 = vmul.u32 %v596, %v587
        %v604 = vadd.s32 %v599, %v601
        %vm605 = vc.u32 %v599, %v601
        %v606 = vadd.s32 %v602, 1
        %v607 = vsel %vm605, %v606, %v602
        %v608 = vadd.s32 %v603, %v607
        %v609 = vadd.s32 %v608, 536870912
        %v610 = vshrl.u32 %v609, 30
        %v611 = vshll.u32 %v610, 30
        %v612 = vsub.s32 %v608, %v611
        %vm613 = vcmp.lt.s32.totalorder %v612, 0
        %v614 = vsub.s32 0, %v612
        %v615 = vsel %vm613, %v614, %v612
        %v616 = vclz %v615
        %v617 = vsub.s32 %v616, 2
        %vm618 = vcmp.gt.s32.totalorder 0, %v617
        %v619 = vsel %vm618, 0, %v617
        %v620 = vsub.s32 32, %v619
        %v621 = vshll.u32 %v612, %v619
        %v622 = vshrl.u32 %v604, %v620
        %v623 = vor.u32 %v621, %v622
        %v624 = vsub.s32 4294967266, %v619
        %v625 = vadd.s32 %v624, 127
        %v626 = vshll.u32 %v625, 23
        %v627 = vor.u32 4788187, %v626
        %v628 = vand.u32 2147483647, %v627
        %v630 = vcvt.s32.f32 %v623
        %v631 = vmul.f32 %v630, %v628
        %v632 = vxor.u32 %v631, 2147483648
        %v633 = vsel %vm550, %v632, %v631
        %v634 = vsub.s32 4, %v610
        %v635 = vsel %vm550, %v634, %v610
        %v636 = vsel %vm549, %v227, %v633
        %v637 = vsel %vm549, 0, %v635
        %v638 = vcosq.f32.pop %v636
        %v639 = vsinq.f32.pop %v636
        %vm640 = vweird.f32 %v227
        %v641 = vadd.s32 %v637, 3
        %v642 = vand.u32 %v641, 3
        %vm643 = vcmp.lt.s32.totalorder %v642, 2
        %vm644 = vcmp.eq.s32.totalorder %v642, 0
        %v645 = vxor.u32 %v639, 2147483648
        %v646 = vsel %vm644, %v638, %v645
        %vm647 = vcmp.eq.s32.totalorder %v642, 2
        %v648 = vxor.u32 %v638, 2147483648
        %v649 = vsel %vm647, %v648, %v639
        %v650 = vsel %vm643, %v646, %v649
        %v651 = vsel %vm640, nan, %v650
        %v652 = vand.u32 2147483647, %v228
        %vm653 = vcmp.le.f32.partialorder %v652, 0.7853982
        %vm654 = vcmp.lt.s32.totalorder %v228, 0
        %v655 = vand.u32 %v228, 2139095040
        %v656 = vshrl.u32 %v655, 23
        %v657 = vsub.s32 %v656, 127
        %v658 = vand.u32 2147483647, %v228
        %v659 = vand.u32 %v658, 8388607
        %v660 = vor.u32 %v659, 8388608
        %v661 = vsub.s32 0, %v660
        %v662 = vadd.s32 %v657, 1
        %vm663 = vcmp.gt.s32.totalorder %v662, 0
        %v664 = vsel %vm663, %v662, 0
        %v665 = vshrl.u32 %v664, 5
        %v666 = vand.u32 %v664, 31
        %v667 = vsub.s32 32, %v666
        %v668 = vshrl.u32 683565275, %v667
        %v669 = vshll.u32 683565275, %v666
        %v670 = vshrl.u32 2475754826, %v667
        %v671 = vor.u32 %v669, %v670
        %v672 = vshll.u32 2475754826, %v666
        %v673 = vshrl.u32 2131351028, %v667
        %v674 = vor.u32 %v672, %v673
        %v675 = vshll.u32 2131351028, %v666
        %v676 = vshrl.u32 2102212464, %v667
        %v677 = vor.u32 %v675, %v676
        %v678 = vshll.u32 2102212464, %v666
        %v679 = vshrl.u32 920167782, %v667
        %v680 = vor.u32 %v678, %v679
        %v681 = vshll.u32 920167782, %v666
        %v682 = vshrl.u32 1326507024, %v667
        %v683 = vor.u32 %v681, %v682
        %vm684 = vcmp.lt.s32.totalorder %v665, 1
        %vm685 = vcmp.lt.s32.totalorder %v665, 2
        %vm686 = vcmp.lt.s32.totalorder %v665, 3
        %vm687 = vcmp.lt.s32.totalorder %v665, 4
        %v688 = vsel %vm684, %v668, %v671
        %v689 = vsel %vm687, %v677, 2102212464
        %v690 = vsel %vm686, %v674, %v689
        %v691 = vsel %vm685, %v688, %v690
        %v692 = vsel %vm684, %v671, %v674
        %v693 = vsel %vm687, %v680, 920167782
        %v694 = vsel %vm686, %v677, %v693
        %v695 = vsel %vm685, %v692, %v694
        %v696 = vsel %vm684, %v674, %v677
        %v697 = vsel %vm687, %v683, 1326507024
        %v698 = vsel %vm686, %v680, %v697
        %v699 = vsel %vm685, %v696, %v698
        %v700 = vshll.u32 %v660, 8
        %v701 = vmul.u32.u64.compose %v700, %v699
        %v702 = vextract.low.u32 %v701
        %v703 = vextract.high.u32 %v701
        %v704 = vmul.u32.u64.compose %v700, %v695
        %v705 = vextract.low.u32 %v704
        %v706 = vextract.high.u32 %v704
        %v707 = vmul.u32 %v700, %v691
        %v708 = vadd.s32 %v703, %v705
        %vm709 = vc.u32 %v703, %v705
        %v710 = vadd.s32 %v706, 1
        %v711 = vsel %vm709, %v710, %v706
        %v712 = vadd.s32 %v707, %v711
        %v713 = vadd.s32 %v712, 536870912
        %v714 = vshrl.u32 %v713, 30
        %v715 = vshll.u32 %v714, 30
        %v716 = vsub.s32 %v712, %v715
        %vm717 = vcmp.lt.s32.totalorder %v716, 0
        %v718 = vsub.s32 0, %v716
        %v719 = vsel %vm717, %v718, %v716
        %v720 = vclz %v719
        %v721 = vsub.s32 %v720, 2
        %vm722 = vcmp.gt.s32.totalorder 0, %v721
        %v723 = vsel %vm722, 0, %v721
        %v724 = vsub.s32 32, %v723
        %v725 = vshll.u32 %v716, %v723
        %v726 = vshrl.u32 %v708, %v724
        %v727 = vor.u32 %v725, %v726
        %v728 = vsub.s32 4294967266, %v723
        %v729 = vadd.s32 %v728, 127
        %v730 = vshll.u32 %v729, 23
        %v731 = vor.u32 4788187, %v730
        %v732 = vand.u32 2147483647, %v731
        %v734 = vcvt.s32.f32 %v727
        %v735 = vmul.f32 %v734, %v732
        %v736 = vxor.u32 %v735, 2147483648
        %v737 = vsel %vm654, %v736, %v735
        %v738 = vsub.s32 4, %v714
        %v739 = vsel %vm654, %v738, %v714
        %v740 = vsel %vm653, %v228, %v737
        %v741 = vsel %vm653, 0, %v739
        %v742 = vcosq.f32.pop %v740
        %v743 = vsinq.f32.pop %v740
        %vm744 = vweird.f32 %v228
        %v745 = vadd.s32 %v741, 3
        %v746 = vand.u32 %v745, 3
        %vm747 = vcmp.lt.s32.totalorder %v746, 2
        %vm748 = vcmp.eq.s32.totalorder %v746, 0
        %v749 = vxor.u32 %v743, 2147483648
        %v750 = vsel %vm748, %v742, %v749
        %vm751 = vcmp.eq.s32.totalorder %v746, 2
        %v752 = vxor.u32 %v742, 2147483648
        %v753 = vsel %vm751, %v752, %v743
        %v754 = vsel %vm747, %v750, %v753
        %v755 = vsel %vm744, nan, %v754
        %v756 = vand.u32 2147483647, %v229
        %vm757 = vcmp.le.f32.partialorder %v756, 0.7853982
        %vm758 = vcmp.lt.s32.totalorder %v229, 0
        %v759 = vand.u32 %v229, 2139095040
        %v760 = vshrl.u32 %v759, 23
        %v761 = vsub.s32 %v760, 127
        %v762 = vand.u32 2147483647, %v229
        %v763 = vand.u32 %v762, 8388607
        %v764 = vor.u32 %v763, 8388608
        %v765 = vsub.s32 0, %v764
        %v766 = vadd.s32 %v761, 1
        %vm767 = vcmp.gt.s32.totalorder %v766, 0
        %v768 = vsel %vm767, %v766, 0
        %v769 = vshrl.u32 %v768, 5
        %v770 = vand.u32 %v768, 31
        %v771 = vsub.s32 32, %v770
        %v772 = vshrl.u32 683565275, %v771
        %v773 = vshll.u32 683565275, %v770
        %v774 = vshrl.u32 2475754826, %v771
        %v775 = vor.u32 %v773, %v774
        %v776 = vshll.u32 2475754826, %v770
        %v777 = vshrl.u32 2131351028, %v771
        %v778 = vor.u32 %v776, %v777
        %v779 = vshll.u32 2131351028, %v770
        %v780 = vshrl.u32 2102212464, %v771
        %v781 = vor.u32 %v779, %v780
        %v782 = vshll.u32 2102212464, %v770
        %v783 = vshrl.u32 920167782, %v771
        %v784 = vor.u32 %v782, %v783
        %v785 = vshll.u32 920167782, %v770
        %v786 = vshrl.u32 1326507024, %v771
        %v787 = vor.u32 %v785, %v786
        %vm788 = vcmp.lt.s32.totalorder %v769, 1
        %vm789 = vcmp.lt.s32.totalorder %v769, 2
        %vm790 = vcmp.lt.s32.totalorder %v769, 3
        %vm791 = vcmp.lt.s32.totalorder %v769, 4
        %v792 = vsel %vm788, %v772, %v775
        %v793 = vsel %vm791, %v781, 2102212464
        %v794 = vsel %vm790, %v778, %v793
        %v795 = vsel %vm789, %v792, %v794
        %v796 = vsel %vm788, %v775, %v778
        %v797 = vsel %vm791, %v784, 920167782
        %v798 = vsel %vm790, %v781, %v797
        %v799 = vsel %vm789, %v796, %v798
        %v800 = vsel %vm788, %v778, %v781
        %v801 = vsel %vm791, %v787, 1326507024
        %v802 = vsel %vm790, %v784, %v801
        %v803 = vsel %vm789, %v800, %v802
        %v804 = vshll.u32 %v764, 8
        %v805 = vmul.u32.u64.compose %v804, %v803
        %v806 = vextract.low.u32 %v805
        %v807 = vextract.high.u32 %v805
        %v808 = vmul.u32.u64.compose %v804, %v799
        %v809 = vextract.low.u32 %v808
        %v810 = vextract.high.u32 %v808
        %v811 = vmul.u32 %v804, %v795
        %v812 = vadd.s32 %v807, %v809
        %vm813 = vc.u32 %v807, %v809
        %v814 = vadd.s32 %v810, 1
        %v815 = vsel %vm813, %v814, %v810
        %v816 = vadd.s32 %v811, %v815
        %v817 = vadd.s32 %v816, 536870912
        %v818 = vshrl.u32 %v817, 30
        %v819 = vshll.u32 %v818, 30
        %v820 = vsub.s32 %v816, %v819
        %vm821 = vcmp.lt.s32.totalorder %v820, 0
        %v822 = vsub.s32 0, %v820
        %v823 = vsel %vm821, %v822, %v820
        %v824 = vclz %v823
        %v825 = vsub.s32 %v824, 2
        %vm826 = vcmp.gt.s32.totalorder 0, %v825
        %v827 = vsel %vm826, 0, %v825
        %v828 = vsub.s32 32, %v827
        %v829 = vshll.u32 %v820, %v827
        %v830 = vshrl.u32 %v812, %v828
        %v831 = vor.u32 %v829, %v830
        %v832 = vsub.s32 4294967266, %v827
        %v833 = vadd.s32 %v832, 127
        %v834 = vshll.u32 %v833, 23
        %v835 = vor.u32 4788187, %v834
        %v836 = vand.u32 2147483647, %v835
        %v838 = vcvt.s32.f32 %v831
        %v839 = vmul.f32 %v838, %v836
        %v840 = vxor.u32 %v839, 2147483648
        %v841 = vsel %vm758, %v840, %v839
        %v842 = vsub.s32 4, %v818
        %v843 = vsel %vm758, %v842, %v818
        %v844 = vsel %vm757, %v229, %v841
        %v845 = vsel %vm757, 0, %v843
        %v846 = vcosq.f32.pop %v844
        %v847 = vsinq.f32.pop %v844
        %vm848 = vweird.f32 %v229
        %v849 = vadd.s32 %v845, 3
        %v850 = vand.u32 %v849, 3
        %vm851 = vcmp.lt.s32.totalorder %v850, 2
        %vm852 = vcmp.eq.s32.totalorder %v850, 0
        %v853 = vxor.u32 %v847, 2147483648
        %v854 = vsel %vm852, %v846, %v853
        %vm855 = vcmp.eq.s32.totalorder %v850, 2
        %v856 = vxor.u32 %v846, 2147483648
        %v857 = vsel %vm855, %v856, %v847
        %v858 = vsel %vm851, %v854, %v857
        %v859 = vsel %vm848, nan, %v858
        %v860 = vand.u32 2147483647, %v230
        %vm861 = vcmp.le.f32.partialorder %v860, 0.7853982
        %vm862 = vcmp.lt.s32.totalorder %v230, 0
        %v863 = vand.u32 %v230, 2139095040
        %v864 = vshrl.u32 %v863, 23
        %v865 = vsub.s32 %v864, 127
        %v866 = vand.u32 2147483647, %v230
        %v867 = vand.u32 %v866, 8388607
        %v868 = vor.u32 %v867, 8388608
        %v869 = vsub.s32 0, %v868
        %v870 = vadd.s32 %v865, 1
        %vm871 = vcmp.gt.s32.totalorder %v870, 0
        %v872 = vsel %vm871, %v870, 0
        %v873 = vshrl.u32 %v872, 5
        %v874 = vand.u32 %v872, 31
        %v875 = vsub.s32 32, %v874
        %v876 = vshrl.u32 683565275, %v875
        %v877 = vshll.u32 683565275, %v874
        %v878 = vshrl.u32 2475754826, %v875
        %v879 = vor.u32 %v877, %v878
        %v880 = vshll.u32 2475754826, %v874
        %v881 = vshrl.u32 2131351028, %v875
        %v882 = vor.u32 %v880, %v881
        %v883 = vshll.u32 2131351028, %v874
        %v884 = vshrl.u32 2102212464, %v875
        %v885 = vor.u32 %v883, %v884
        %v886 = vshll.u32 2102212464, %v874
        %v887 = vshrl.u32 920167782, %v875
        %v888 = vor.u32 %v886, %v887
        %v889 = vshll.u32 920167782, %v874
        %v890 = vshrl.u32 1326507024, %v875
        %v891 = vor.u32 %v889, %v890
        %vm892 = vcmp.lt.s32.totalorder %v873, 1
        %vm893 = vcmp.lt.s32.totalorder %v873, 2
        %vm894 = vcmp.lt.s32.totalorder %v873, 3
        %vm895 = vcmp.lt.s32.totalorder %v873, 4
        %v896 = vsel %vm892, %v876, %v879
        %v897 = vsel %vm895, %v885, 2102212464
        %v898 = vsel %vm894, %v882, %v897
        %v899 = vsel %vm893, %v896, %v898
        %v900 = vsel %vm892, %v879, %v882
        %v901 = vsel %vm895, %v888, 920167782
        %v902 = vsel %vm894, %v885, %v901
        %v903 = vsel %vm893, %v900, %v902
        %v904 = vsel %vm892, %v882, %v885
        %v905 = vsel %vm895, %v891, 1326507024
        %v906 = vsel %vm894, %v888, %v905
        %v907 = vsel %vm893, %v904, %v906
        %v908 = vshll.u32 %v868, 8
        %v909 = vmul.u32.u64.compose %v908, %v907
        %v910 = vextract.low.u32 %v909
        %v911 = vextract.high.u32 %v909
        %v912 = vmul.u32.u64.compose %v908, %v903
        %v913 = vextract.low.u32 %v912
        %v914 = vextract.high.u32 %v912
        %v915 = vmul.u32 %v908, %v899
        %v916 = vadd.s32 %v911, %v913
        %vm917 = vc.u32 %v911, %v913
        %v918 = vadd.s32 %v914, 1
        %v919 = vsel %vm917, %v918, %v914
        %v920 = vadd.s32 %v915, %v919
        %v921 = vadd.s32 %v920, 536870912
        %v922 = vshrl.u32 %v921, 30
        %v923 = vshll.u32 %v922, 30
        %v924 = vsub.s32 %v920, %v923
        %vm925 = vcmp.lt.s32.totalorder %v924, 0
        %v926 = vsub.s32 0, %v924
        %v927 = vsel %vm925, %v926, %v924
        %v928 = vclz %v927
        %v929 = vsub.s32 %v928, 2
        %vm930 = vcmp.gt.s32.totalorder 0, %v929
        %v931 = vsel %vm930, 0, %v929
        %v932 = vsub.s32 32, %v931
        %v933 = vshll.u32 %v924, %v931
        %v934 = vshrl.u32 %v916, %v932
        %v935 = vor.u32 %v933, %v934
        %v936 = vsub.s32 4294967266, %v931
        %v937 = vadd.s32 %v936, 127
        %v938 = vshll.u32 %v937, 23
        %v939 = vor.u32 4788187, %v938
        %v940 = vand.u32 2147483647, %v939
        %v942 = vcvt.s32.f32 %v935
        %v943 = vmul.f32 %v942, %v940
        %v944 = vxor.u32 %v943, 2147483648
        %v945 = vsel %vm862, %v944, %v943
        %v946 = vsub.s32 4, %v922
        %v947 = vsel %vm862, %v946, %v922
        %v948 = vsel %vm861, %v230, %v945
        %v949 = vsel %vm861, 0, %v947
        %v950 = vcosq.f32.pop %v948
        %v951 = vsinq.f32.pop %v948
        %vm952 = vweird.f32 %v230
        %v953 = vadd.s32 %v949, 3
        %v954 = vand.u32 %v953, 3
        %vm955 = vcmp.lt.s32.totalorder %v954, 2
        %vm956 = vcmp.eq.s32.totalorder %v954, 0
        %v957 = vxor.u32 %v951, 2147483648
        %v958 = vsel %vm956, %v950, %v957
        %vm959 = vcmp.eq.s32.totalorder %v954, 2
        %v960 = vxor.u32 %v950, 2147483648
        %v961 = vsel %vm959, %v960, %v951
        %v962 = vsel %vm955, %v958, %v961
        %v963 = vsel %vm952, nan, %v962
        %v964 = vand.u32 2147483647, %v231
        %vm965 = vcmp.le.f32.partialorder %v964, 0.7853982
        %vm966 = vcmp.lt.s32.totalorder %v231, 0
        %v967 = vand.u32 %v231, 2139095040
        %v968 = vshrl.u32 %v967, 23
        %v969 = vsub.s32 %v968, 127
        %v970 = vand.u32 2147483647, %v231
        %v971 = vand.u32 %v970, 8388607
        %v972 = vor.u32 %v971, 8388608
        %v973 = vsub.s32 0, %v972
        %v974 = vadd.s32 %v969, 1
        %vm975 = vcmp.gt.s32.totalorder %v974, 0
        %v976 = vsel %vm975, %v974, 0
        %v977 = vshrl.u32 %v976, 5
        %v978 = vand.u32 %v976, 31
        %v979 = vsub.s32 32, %v978
        %v980 = vshrl.u32 683565275, %v979
        %v981 = vshll.u32 683565275, %v978
        %v982 = vshrl.u32 2475754826, %v979
        %v983 = vor.u32 %v981, %v982
        %v984 = vshll.u32 2475754826, %v978
        %v985 = vshrl.u32 2131351028, %v979
        %v986 = vor.u32 %v984, %v985
        %v987 = vshll.u32 2131351028, %v978
        %v988 = vshrl.u32 2102212464, %v979
        %v989 = vor.u32 %v987, %v988
        %v990 = vshll.u32 2102212464, %v978
        %v991 = vshrl.u32 920167782, %v979
        %v992 = vor.u32 %v990, %v991
        %v993 = vshll.u32 920167782, %v978
        %v994 = vshrl.u32 1326507024, %v979
        %v995 = vor.u32 %v993, %v994
        %vm996 = vcmp.lt.s32.totalorder %v977, 1
        %vm997 = vcmp.lt.s32.totalorder %v977, 2
        %vm998 = vcmp.lt.s32.totalorder %v977, 3
        %vm999 = vcmp.lt.s32.totalorder %v977, 4
        %v1000 = vsel %vm996, %v980, %v983
        %v1001 = vsel %vm999, %v989, 2102212464
        %v1002 = vsel %vm998, %v986, %v1001
        %v1003 = vsel %vm997, %v1000, %v1002
        %v1004 = vsel %vm996, %v983, %v986
        %v1005 = vsel %vm999, %v992, 920167782
        %v1006 = vsel %vm998, %v989, %v1005
        %v1007 = vsel %vm997, %v1004, %v1006
        %v1008 = vsel %vm996, %v986, %v989
        %v1009 = vsel %vm999, %v995, 1326507024
        %v1010 = vsel %vm998, %v992, %v1009
        %v1011 = vsel %vm997, %v1008, %v1010
        %v1012 = vshll.u32 %v972, 8
        %v1013 = vmul.u32.u64.compose %v1012, %v1011
        %v1014 = vextract.low.u32 %v1013
        %v1015 = vextract.high.u32 %v1013
        %v1016 = vmul.u32.u64.compose %v1012, %v1007
        %v1017 = vextract.low.u32 %v1016
        %v1018 = vextract.high.u32 %v1016
        %v1019 = vmul.u32 %v1012, %v1003
        %v1020 = vadd.s32 %v1015, %v1017
        %vm1021 = vc.u32 %v1015, %v1017
        %v1022 = vadd.s32 %v1018, 1
        %v1023 = vsel %vm1021, %v1022, %v1018
        %v1024 = vadd.s32 %v1019, %v1023
        %v1025 = vadd.s32 %v1024, 536870912
        %v1026 = vshrl.u32 %v1025, 30
        %v1027 = vshll.u32 %v1026, 30
        %v1028 = vsub.s32 %v1024, %v1027
        %vm1029 = vcmp.lt.s32.totalorder %v1028, 0
        %v1030 = vsub.s32 0, %v1028
        %v1031 = vsel %vm1029, %v1030, %v1028
        %v1032 = vclz %v1031
        %v1033 = vsub.s32 %v1032, 2
        %vm1034 = vcmp.gt.s32.totalorder 0, %v1033
        %v1035 = vsel %vm1034, 0, %v1033
        %v1036 = vsub.s32 32, %v1035
        %v1037 = vshll.u32 %v1028, %v1035
        %v1038 = vshrl.u32 %v1020, %v1036
        %v1039 = vor.u32 %v1037, %v1038
        %v1040 = vsub.s32 4294967266, %v1035
        %v1041 = vadd.s32 %v1040, 127
        %v1042 = vshll.u32 %v1041, 23
        %v1043 = vor.u32 4788187, %v1042
        %v1044 = vand.u32 2147483647, %v1043
        %v1046 = vcvt.s32.f32 %v1039
        %v1047 = vmul.f32 %v1046, %v1044
        %v1048 = vxor.u32 %v1047, 2147483648
        %v1049 = vsel %vm966, %v1048, %v1047
        %v1050 = vsub.s32 4, %v1026
        %v1051 = vsel %vm966, %v1050, %v1026
        %v1052 = vsel %vm965, %v231, %v1049
        %v1053 = vsel %vm965, 0, %v1051
        %v1054 = vcosq.f32.pop %v1052
        %v1055 = vsinq.f32.pop %v1052
        %vm1056 = vweird.f32 %v231
        %v1057 = vadd.s32 %v1053, 3
        %v1058 = vand.u32 %v1057, 3
        %vm1059 = vcmp.lt.s32.totalorder %v1058, 2
        %vm1060 = vcmp.eq.s32.totalorder %v1058, 0
        %v1061 = vxor.u32 %v1055, 2147483648
        %v1062 = vsel %vm1060, %v1054, %v1061
        %vm1063 = vcmp.eq.s32.totalorder %v1058, 2
        %v1064 = vxor.u32 %v1054, 2147483648
        %v1065 = vsel %vm1063, %v1064, %v1055
        %v1066 = vsel %vm1059, %v1062, %v1065
        %v1067 = vsel %vm1056, nan, %v1066
        %v1068 = vand.u32 2147483647, %v232
        %vm1069 = vcmp.le.f32.partialorder %v1068, 0.7853982
        %vm1070 = vcmp.lt.s32.totalorder %v232, 0
        %v1071 = vand.u32 %v232, 2139095040
        %v1072 = vshrl.u32 %v1071, 23
        %v1073 = vsub.s32 %v1072, 127
        %v1074 = vand.u32 2147483647, %v232
        %v1075 = vand.u32 %v1074, 8388607
        %v1076 = vor.u32 %v1075, 8388608
        %v1077 = vsub.s32 0, %v1076
        %v1078 = vadd.s32 %v1073, 1
        %vm1079 = vcmp.gt.s32.totalorder %v1078, 0
        %v1080 = vsel %vm1079, %v1078, 0
        %v1081 = vshrl.u32 %v1080, 5
        %v1082 = vand.u32 %v1080, 31
        %v1083 = vsub.s32 32, %v1082
        %v1084 = vshrl.u32 683565275, %v1083
        %v1085 = vshll.u32 683565275, %v1082
        %v1086 = vshrl.u32 2475754826, %v1083
        %v1087 = vor.u32 %v1085, %v1086
        %v1088 = vshll.u32 2475754826, %v1082
        %v1089 = vshrl.u32 2131351028, %v1083
        %v1090 = vor.u32 %v1088, %v1089
        %v1091 = vshll.u32 2131351028, %v1082
        %v1092 = vshrl.u32 2102212464, %v1083
        %v1093 = vor.u32 %v1091, %v1092
        %v1094 = vshll.u32 2102212464, %v1082
        %v1095 = vshrl.u32 920167782, %v1083
        %v1096 = vor.u32 %v1094, %v1095
        %v1097 = vshll.u32 920167782, %v1082
        %v1098 = vshrl.u32 1326507024, %v1083
        %v1099 = vor.u32 %v1097, %v1098
        %vm1100 = vcmp.lt.s32.totalorder %v1081, 1
        %vm1101 = vcmp.lt.s32.totalorder %v1081, 2
        %vm1102 = vcmp.lt.s32.totalorder %v1081, 3
        %vm1103 = vcmp.lt.s32.totalorder %v1081, 4
        %v1104 = vsel %vm1100, %v1084, %v1087
        %v1105 = vsel %vm1103, %v1093, 2102212464
        %v1106 = vsel %vm1102, %v1090, %v1105
        %v1107 = vsel %vm1101, %v1104, %v1106
        %v1108 = vsel %vm1100, %v1087, %v1090
        %v1109 = vsel %vm1103, %v1096, 920167782
        %v1110 = vsel %vm1102, %v1093, %v1109
        %v1111 = vsel %vm1101, %v1108, %v1110
        %v1112 = vsel %vm1100, %v1090, %v1093
        %v1113 = vsel %vm1103, %v1099, 1326507024
        %v1114 = vsel %vm1102, %v1096, %v1113
        %v1115 = vsel %vm1101, %v1112, %v1114
        %v1116 = vshll.u32 %v1076, 8
        %v1117 = vmul.u32.u64.compose %v1116, %v1115
        %v1118 = vextract.low.u32 %v1117
        %v1119 = vextract.high.u32 %v1117
        %v1120 = vmul.u32.u64.compose %v1116, %v1111
        %v1121 = vextract.low.u32 %v1120
        %v1122 = vextract.high.u32 %v1120
        %v1123 = vmul.u32 %v1116, %v1107
        %v1124 = vadd.s32 %v1119, %v1121
        %vm1125 = vc.u32 %v1119, %v1121
        %v1126 = vadd.s32 %v1122, 1
        %v1127 = vsel %vm1125, %v1126, %v1122
        %v1128 = vadd.s32 %v1123, %v1127
        %v1129 = vadd.s32 %v1128, 536870912
        %v1130 = vshrl.u32 %v1129, 30
        %v1131 = vshll.u32 %v1130, 30
        %v1132 = vsub.s32 %v1128, %v1131
        %vm1133 = vcmp.lt.s32.totalorder %v1132, 0
        %v1134 = vsub.s32 0, %v1132
        %v1135 = vsel %vm1133, %v1134, %v1132
        %v1136 = vclz %v1135
        %v1137 = vsub.s32 %v1136, 2
        %vm1138 = vcmp.gt.s32.totalorder 0, %v1137
        %v1139 = vsel %vm1138, 0, %v1137
        %v1140 = vsub.s32 32, %v1139
        %v1141 = vshll.u32 %v1132, %v1139
        %v1142 = vshrl.u32 %v1124, %v1140
        %v1143 = vor.u32 %v1141, %v1142
        %v1144 = vsub.s32 4294967266, %v1139
        %v1145 = vadd.s32 %v1144, 127
        %v1146 = vshll.u32 %v1145, 23
        %v1147 = vor.u32 4788187, %v1146
        %v1148 = vand.u32 2147483647, %v1147
        %v1150 = vcvt.s32.f32 %v1143
        %v1151 = vmul.f32 %v1150, %v1148
        %v1152 = vxor.u32 %v1151, 2147483648
        %v1153 = vsel %vm1070, %v1152, %v1151
        %v1154 = vsub.s32 4, %v1130
        %v1155 = vsel %vm1070, %v1154, %v1130
        %v1156 = vsel %vm1069, %v232, %v1153
        %v1157 = vsel %vm1069, 0, %v1155
        %v1158 = vcosq.f32.pop %v1156
        %v1159 = vsinq.f32.pop %v1156
        %vm1160 = vweird.f32 %v232
        %v1161 = vadd.s32 %v1157, 3
        %v1162 = vand.u32 %v1161, 3
        %vm1163 = vcmp.lt.s32.totalorder %v1162, 2
        %vm1164 = vcmp.eq.s32.totalorder %v1162, 0
        %v1165 = vxor.u32 %v1159, 2147483648
        %v1166 = vsel %vm1164, %v1158, %v1165
        %vm1167 = vcmp.eq.s32.totalorder %v1162, 2
        %v1168 = vxor.u32 %v1158, 2147483648
        %v1169 = vsel %vm1167, %v1168, %v1159
        %v1170 = vsel %vm1163, %v1166, %v1169
        %v1171 = vsel %vm1160, nan, %v1170
        %v1172 = vand.u32 2147483647, %v233
        %vm1173 = vcmp.le.f32.partialorder %v1172, 0.7853982
        %vm1174 = vcmp.lt.s32.totalorder %v233, 0
        %v1175 = vand.u32 %v233, 2139095040
        %v1176 = vshrl.u32 %v1175, 23
        %v1177 = vsub.s32 %v1176, 127
        %v1178 = vand.u32 2147483647, %v233
        %v1179 = vand.u32 %v1178, 8388607
        %v1180 = vor.u32 %v1179, 8388608
        %v1181 = vsub.s32 0, %v1180
        %v1182 = vadd.s32 %v1177, 1
        %vm1183 = vcmp.gt.s32.totalorder %v1182, 0
        %v1184 = vsel %vm1183, %v1182, 0
        %v1185 = vshrl.u32 %v1184, 5
        %v1186 = vand.u32 %v1184, 31
        %v1187 = vsub.s32 32, %v1186
        %v1188 = vshrl.u32 683565275, %v1187
        %v1189 = vshll.u32 683565275, %v1186
        %v1190 = vshrl.u32 2475754826, %v1187
        %v1191 = vor.u32 %v1189, %v1190
        %v1192 = vshll.u32 2475754826, %v1186
        %v1193 = vshrl.u32 2131351028, %v1187
        %v1194 = vor.u32 %v1192, %v1193
        %v1195 = vshll.u32 2131351028, %v1186
        %v1196 = vshrl.u32 2102212464, %v1187
        %v1197 = vor.u32 %v1195, %v1196
        %v1198 = vshll.u32 2102212464, %v1186
        %v1199 = vshrl.u32 920167782, %v1187
        %v1200 = vor.u32 %v1198, %v1199
        %v1201 = vshll.u32 920167782, %v1186
        %v1202 = vshrl.u32 1326507024, %v1187
        %v1203 = vor.u32 %v1201, %v1202
        %vm1204 = vcmp.lt.s32.totalorder %v1185, 1
        %vm1205 = vcmp.lt.s32.totalorder %v1185, 2
        %vm1206 = vcmp.lt.s32.totalorder %v1185, 3
        %vm1207 = vcmp.lt.s32.totalorder %v1185, 4
        %v1208 = vsel %vm1204, %v1188, %v1191
        %v1209 = vsel %vm1207, %v1197, 2102212464
        %v1210 = vsel %vm1206, %v1194, %v1209
        %v1211 = vsel %vm1205, %v1208, %v1210
        %v1212 = vsel %vm1204, %v1191, %v1194
        %v1213 = vsel %vm1207, %v1200, 920167782
        %v1214 = vsel %vm1206, %v1197, %v1213
        %v1215 = vsel %vm1205, %v1212, %v1214
        %v1216 = vsel %vm1204, %v1194, %v1197
        %v1217 = vsel %vm1207, %v1203, 1326507024
        %v1218 = vsel %vm1206, %v1200, %v1217
        %v1219 = vsel %vm1205, %v1216, %v1218
        %v1220 = vshll.u32 %v1180, 8
        %v1221 = vmul.u32.u64.compose %v1220, %v1219
        %v1222 = vextract.low.u32 %v1221
        %v1223 = vextract.high.u32 %v1221
        %v1224 = vmul.u32.u64.compose %v1220, %v1215
        %v1225 = vextract.low.u32 %v1224
        %v1226 = vextract.high.u32 %v1224
        %v1227 = vmul.u32 %v1220, %v1211
        %v1228 = vadd.s32 %v1223, %v1225
        %vm1229 = vc.u32 %v1223, %v1225
        %v1230 = vadd.s32 %v1226, 1
        %v1231 = vsel %vm1229, %v1230, %v1226
        %v1232 = vadd.s32 %v1227, %v1231
        %v1233 = vadd.s32 %v1232, 536870912
        %v1234 = vshrl.u32 %v1233, 30
        %v1235 = vshll.u32 %v1234, 30
        %v1236 = vsub.s32 %v1232, %v1235
        %vm1237 = vcmp.lt.s32.totalorder %v1236, 0
        %v1238 = vsub.s32 0, %v1236
        %v1239 = vsel %vm1237, %v1238, %v1236
        %v1240 = vclz %v1239
        %v1241 = vsub.s32 %v1240, 2
        %vm1242 = vcmp.gt.s32.totalorder 0, %v1241
        %v1243 = vsel %vm1242, 0, %v1241
        %v1244 = vsub.s32 32, %v1243
        %v1245 = vshll.u32 %v1236, %v1243
        %v1246 = vshrl.u32 %v1228, %v1244
        %v1247 = vor.u32 %v1245, %v1246
        %v1248 = vsub.s32 4294967266, %v1243
        %v1249 = vadd.s32 %v1248, 127
        %v1250 = vshll.u32 %v1249, 23
        %v1251 = vor.u32 4788187, %v1250
        %v1252 = vand.u32 2147483647, %v1251
        %v1254 = vcvt.s32.f32 %v1247
        %v1255 = vmul.f32 %v1254, %v1252
        %v1256 = vxor.u32 %v1255, 2147483648
        %v1257 = vsel %vm1174, %v1256, %v1255
        %v1258 = vsub.s32 4, %v1234
        %v1259 = vsel %vm1174, %v1258, %v1234
        %v1260 = vsel %vm1173, %v233, %v1257
        %v1261 = vsel %vm1173, 0, %v1259
        %v1262 = vcosq.f32.pop %v1260
        %v1263 = vsinq.f32.pop %v1260
        %vm1264 = vweird.f32 %v233
        %v1265 = vadd.s32 %v1261, 3
        %v1266 = vand.u32 %v1265, 3
        %vm1267 = vcmp.lt.s32.totalorder %v1266, 2
        %vm1268 = vcmp.eq.s32.totalorder %v1266, 0
        %v1269 = vxor.u32 %v1263, 2147483648
        %v1270 = vsel %vm1268, %v1262, %v1269
        %vm1271 = vcmp.eq.s32.totalorder %v1266, 2
        %v1272 = vxor.u32 %v1262, 2147483648
        %v1273 = vsel %vm1271, %v1272, %v1263
        %v1274 = vsel %vm1267, %v1270, %v1273
        %v1275 = vsel %vm1264, nan, %v1274
        %v1276 = vand.u32 2147483647, %v234
        %vm1277 = vcmp.le.f32.partialorder %v1276, 0.7853982
        %vm1278 = vcmp.lt.s32.totalorder %v234, 0
        %v1279 = vand.u32 %v234, 2139095040
        %v1280 = vshrl.u32 %v1279, 23
        %v1281 = vsub.s32 %v1280, 127
        %v1282 = vand.u32 2147483647, %v234
        %v1283 = vand.u32 %v1282, 8388607
        %v1284 = vor.u32 %v1283, 8388608
        %v1285 = vsub.s32 0, %v1284
        %v1286 = vadd.s32 %v1281, 1
        %vm1287 = vcmp.gt.s32.totalorder %v1286, 0
        %v1288 = vsel %vm1287, %v1286, 0
        %v1289 = vshrl.u32 %v1288, 5
        %v1290 = vand.u32 %v1288, 31
        %v1291 = vsub.s32 32, %v1290
        %v1292 = vshrl.u32 683565275, %v1291
        %v1293 = vshll.u32 683565275, %v1290
        %v1294 = vshrl.u32 2475754826, %v1291
        %v1295 = vor.u32 %v1293, %v1294
        %v1296 = vshll.u32 2475754826, %v1290
        %v1297 = vshrl.u32 2131351028, %v1291
        %v1298 = vor.u32 %v1296, %v1297
        %v1299 = vshll.u32 2131351028, %v1290
        %v1300 = vshrl.u32 2102212464, %v1291
        %v1301 = vor.u32 %v1299, %v1300
        %v1302 = vshll.u32 2102212464, %v1290
        %v1303 = vshrl.u32 920167782, %v1291
        %v1304 = vor.u32 %v1302, %v1303
        %v1305 = vshll.u32 920167782, %v1290
        %v1306 = vshrl.u32 1326507024, %v1291
        %v1307 = vor.u32 %v1305, %v1306
        %vm1308 = vcmp.lt.s32.totalorder %v1289, 1
        %vm1309 = vcmp.lt.s32.totalorder %v1289, 2
        %vm1310 = vcmp.lt.s32.totalorder %v1289, 3
        %vm1311 = vcmp.lt.s32.totalorder %v1289, 4
        %v1312 = vsel %vm1308, %v1292, %v1295
        %v1313 = vsel %vm1311, %v1301, 2102212464
        %v1314 = vsel %vm1310, %v1298, %v1313
        %v1315 = vsel %vm1309, %v1312, %v1314
        %v1316 = vsel %vm1308, %v1295, %v1298
        %v1317 = vsel %vm1311, %v1304, 920167782
        %v1318 = vsel %vm1310, %v1301, %v1317
        %v1319 = vsel %vm1309, %v1316, %v1318
        %v1320 = vsel %vm1308, %v1298, %v1301
        %v1321 = vsel %vm1311, %v1307, 1326507024
        %v1322 = vsel %vm1310, %v1304, %v1321
        %v1323 = vsel %vm1309, %v1320, %v1322
        %v1324 = vshll.u32 %v1284, 8
        %v1325 = vmul.u32.u64.compose %v1324, %v1323
        %v1326 = vextract.low.u32 %v1325
        %v1327 = vextract.high.u32 %v1325
        %v1328 = vmul.u32.u64.compose %v1324, %v1319
        %v1329 = vextract.low.u32 %v1328
        %v1330 = vextract.high.u32 %v1328
        %v1331 = vmul.u32 %v1324, %v1315
        %v1332 = vadd.s32 %v1327, %v1329
        %vm1333 = vc.u32 %v1327, %v1329
        %v1334 = vadd.s32 %v1330, 1
        %v1335 = vsel %vm1333, %v1334, %v1330
        %v1336 = vadd.s32 %v1331, %v1335
        %v1337 = vadd.s32 %v1336, 536870912
        %v1338 = vshrl.u32 %v1337, 30
        %v1339 = vshll.u32 %v1338, 30
        %v1340 = vsub.s32 %v1336, %v1339
        %vm1341 = vcmp.lt.s32.totalorder %v1340, 0
        %v1342 = vsub.s32 0, %v1340
        %v1343 = vsel %vm1341, %v1342, %v1340
        %v1344 = vclz %v1343
        %v1345 = vsub.s32 %v1344, 2
        %vm1346 = vcmp.gt.s32.totalorder 0, %v1345
        %v1347 = vsel %vm1346, 0, %v1345
        %v1348 = vsub.s32 32, %v1347
        %v1349 = vshll.u32 %v1340, %v1347
        %v1350 = vshrl.u32 %v1332, %v1348
        %v1351 = vor.u32 %v1349, %v1350
        %v1352 = vsub.s32 4294967266, %v1347
        %v1353 = vadd.s32 %v1352, 127
        %v1354 = vshll.u32 %v1353, 23
        %v1355 = vor.u32 4788187, %v1354
        %v1356 = vand.u32 2147483647, %v1355
        %v1358 = vcvt.s32.f32 %v1351
        %v1359 = vmul.f32 %v1358, %v1356
        %v1360 = vxor.u32 %v1359, 2147483648
        %v1361 = vsel %vm1278, %v1360, %v1359
        %v1362 = vsub.s32 4, %v1338
        %v1363 = vsel %vm1278, %v1362, %v1338
        %v1364 = vsel %vm1277, %v234, %v1361
        %v1365 = vsel %vm1277, 0, %v1363
        %v1366 = vcosq.f32.pop %v1364
        %v1367 = vsinq.f32.pop %v1364
        %vm1368 = vweird.f32 %v234
        %v1369 = vadd.s32 %v1365, 3
        %v1370 = vand.u32 %v1369, 3
        %vm1371 = vcmp.lt.s32.totalorder %v1370, 2
        %vm1372 = vcmp.eq.s32.totalorder %v1370, 0
        %v1373 = vxor.u32 %v1367, 2147483648
        %v1374 = vsel %vm1372, %v1366, %v1373
        %vm1375 = vcmp.eq.s32.totalorder %v1370, 2
        %v1376 = vxor.u32 %v1366, 2147483648
        %v1377 = vsel %vm1375, %v1376, %v1367
        %v1378 = vsel %vm1371, %v1374, %v1377
        %v1379 = vsel %vm1368, nan, %v1378
        %v1380 = vand.u32 2147483647, %v235
        %vm1381 = vcmp.le.f32.partialorder %v1380, 0.7853982
        %vm1382 = vcmp.lt.s32.totalorder %v235, 0
        %v1383 = vand.u32 %v235, 2139095040
        %v1384 = vshrl.u32 %v1383, 23
        %v1385 = vsub.s32 %v1384, 127
        %v1386 = vand.u32 2147483647, %v235
        %v1387 = vand.u32 %v1386, 8388607
        %v1388 = vor.u32 %v1387, 8388608
        %v1389 = vsub.s32 0, %v1388
        %v1390 = vadd.s32 %v1385, 1
        %vm1391 = vcmp.gt.s32.totalorder %v1390, 0
        %v1392 = vsel %vm1391, %v1390, 0
        %v1393 = vshrl.u32 %v1392, 5
        %v1394 = vand.u32 %v1392, 31
        %v1395 = vsub.s32 32, %v1394
        %v1396 = vshrl.u32 683565275, %v1395
        %v1397 = vshll.u32 683565275, %v1394
        %v1398 = vshrl.u32 2475754826, %v1395
        %v1399 = vor.u32 %v1397, %v1398
        %v1400 = vshll.u32 2475754826, %v1394
        %v1401 = vshrl.u32 2131351028, %v1395
        %v1402 = vor.u32 %v1400, %v1401
        %v1403 = vshll.u32 2131351028, %v1394
        %v1404 = vshrl.u32 2102212464, %v1395
        %v1405 = vor.u32 %v1403, %v1404
        %v1406 = vshll.u32 2102212464, %v1394
        %v1407 = vshrl.u32 920167782, %v1395
        %v1408 = vor.u32 %v1406, %v1407
        %v1409 = vshll.u32 920167782, %v1394
        %v1410 = vshrl.u32 1326507024, %v1395
        %v1411 = vor.u32 %v1409, %v1410
        %vm1412 = vcmp.lt.s32.totalorder %v1393, 1
        %vm1413 = vcmp.lt.s32.totalorder %v1393, 2
        %vm1414 = vcmp.lt.s32.totalorder %v1393, 3
        %vm1415 = vcmp.lt.s32.totalorder %v1393, 4
        %v1416 = vsel %vm1412, %v1396, %v1399
        %v1417 = vsel %vm1415, %v1405, 2102212464
        %v1418 = vsel %vm1414, %v1402, %v1417
        %v1419 = vsel %vm1413, %v1416, %v1418
        %v1420 = vsel %vm1412, %v1399, %v1402
        %v1421 = vsel %vm1415, %v1408, 920167782
        %v1422 = vsel %vm1414, %v1405, %v1421
        %v1423 = vsel %vm1413, %v1420, %v1422
        %v1424 = vsel %vm1412, %v1402, %v1405
        %v1425 = vsel %vm1415, %v1411, 1326507024
        %v1426 = vsel %vm1414, %v1408, %v1425
        %v1427 = vsel %vm1413, %v1424, %v1426
        %v1428 = vshll.u32 %v1388, 8
        %v1429 = vmul.u32.u64.compose %v1428, %v1427
        %v1430 = vextract.low.u32 %v1429
        %v1431 = vextract.high.u32 %v1429
        %v1432 = vmul.u32.u64.compose %v1428, %v1423
        %v1433 = vextract.low.u32 %v1432
        %v1434 = vextract.high.u32 %v1432
        %v1435 = vmul.u32 %v1428, %v1419
        %v1436 = vadd.s32 %v1431, %v1433
        %vm1437 = vc.u32 %v1431, %v1433
        %v1438 = vadd.s32 %v1434, 1
        %v1439 = vsel %vm1437, %v1438, %v1434
        %v1440 = vadd.s32 %v1435, %v1439
        %v1441 = vadd.s32 %v1440, 536870912
        %v1442 = vshrl.u32 %v1441, 30
        %v1443 = vshll.u32 %v1442, 30
        %v1444 = vsub.s32 %v1440, %v1443
        %vm1445 = vcmp.lt.s32.totalorder %v1444, 0
        %v1446 = vsub.s32 0, %v1444
        %v1447 = vsel %vm1445, %v1446, %v1444
        %v1448 = vclz %v1447
        %v1449 = vsub.s32 %v1448, 2
        %vm1450 = vcmp.gt.s32.totalorder 0, %v1449
        %v1451 = vsel %vm1450, 0, %v1449
        %v1452 = vsub.s32 32, %v1451
        %v1453 = vshll.u32 %v1444, %v1451
        %v1454 = vshrl.u32 %v1436, %v1452
        %v1455 = vor.u32 %v1453, %v1454
        %v1456 = vsub.s32 4294967266, %v1451
        %v1457 = vadd.s32 %v1456, 127
        %v1458 = vshll.u32 %v1457, 23
        %v1459 = vor.u32 4788187, %v1458
        %v1460 = vand.u32 2147483647, %v1459
        %v1462 = vcvt.s32.f32 %v1455
        %v1463 = vmul.f32 %v1462, %v1460
        %v1464 = vxor.u32 %v1463, 2147483648
        %v1465 = vsel %vm1382, %v1464, %v1463
        %v1466 = vsub.s32 4, %v1442
        %v1467 = vsel %vm1382, %v1466, %v1442
        %v1468 = vsel %vm1381, %v235, %v1465
        %v1469 = vsel %vm1381, 0, %v1467
        %v1470 = vcosq.f32.pop %v1468
        %v1471 = vsinq.f32.pop %v1468
        %vm1472 = vweird.f32 %v235
        %v1473 = vadd.s32 %v1469, 3
        %v1474 = vand.u32 %v1473, 3
        %vm1475 = vcmp.lt.s32.totalorder %v1474, 2
        %vm1476 = vcmp.eq.s32.totalorder %v1474, 0
        %v1477 = vxor.u32 %v1471, 2147483648
        %v1478 = vsel %vm1476, %v1470, %v1477
        %vm1479 = vcmp.eq.s32.totalorder %v1474, 2
        %v1480 = vxor.u32 %v1470, 2147483648
        %v1481 = vsel %vm1479, %v1480, %v1471
        %v1482 = vsel %vm1475, %v1478, %v1481
        %v1483 = vsel %vm1472, nan, %v1482
        %1484 = vst [vmem:[%s137] sm:$0xff] %v339
        %1485 = vst [vmem:[%s137 + $0x10] sm:$0xff] %v443
        %1486 = vst [vmem:[%s137 + $0x20] sm:$0xff] %v547
        %1487 = vst [vmem:[%s137 + $0x30] sm:$0xff] %v651
        %1488 = vst [vmem:[%s137 + $0x40] sm:$0xff] %v755
        %1489 = vst [vmem:[%s137 + $0x50] sm:$0xff] %v859
        %1490 = vst [vmem:[%s137 + $0x60] sm:$0xff] %v963
        %1491 = vst [vmem:[%s137 + $0x70] sm:$0xff] %v1067
        %1492 = vst [vmem:[%s137 + $0x80] sm:$0xff] %v1171
        %1493 = vst [vmem:[%s137 + $0x90] sm:$0xff] %v1275
        %1494 = vst [vmem:[%s137 + $0xa0] sm:$0xff] %v1379
        %1495 = vst [vmem:[%s137 + $0xb0] sm:$0xff] %v1483
        %v1496 = vand.u32 2147483647, %v224
        %vm1497 = vcmp.le.f32.partialorder %v1496, 0.7853982
        %vm1498 = vcmp.lt.s32.totalorder %v224, 0
        %v1499 = vand.u32 %v224, 2139095040
        %v1500 = vshrl.u32 %v1499, 23
        %v1501 = vsub.s32 %v1500, 127
        %v1502 = vand.u32 2147483647, %v224
        %v1503 = vand.u32 %v1502, 8388607
        %v1504 = vor.u32 %v1503, 8388608
        %v1505 = vsub.s32 0, %v1504
        %v1506 = vadd.s32 %v1501, 1
        %vm1507 = vcmp.gt.s32.totalorder %v1506, 0
        %v1508 = vsel %vm1507, %v1506, 0
        %v1509 = vshrl.u32 %v1508, 5
        %v1510 = vand.u32 %v1508, 31
        %v1511 = vsub.s32 32, %v1510
        %v1512 = vshrl.u32 683565275, %v1511
        %v1513 = vshll.u32 683565275, %v1510
        %v1514 = vshrl.u32 2475754826, %v1511
        %v1515 = vor.u32 %v1513, %v1514
        %v1516 = vshll.u32 2475754826, %v1510
        %v1517 = vshrl.u32 2131351028, %v1511
        %v1518 = vor.u32 %v1516, %v1517
        %v1519 = vshll.u32 2131351028, %v1510
        %v1520 = vshrl.u32 2102212464, %v1511
        %v1521 = vor.u32 %v1519, %v1520
        %v1522 = vshll.u32 2102212464, %v1510
        %v1523 = vshrl.u32 920167782, %v1511
        %v1524 = vor.u32 %v1522, %v1523
        %v1525 = vshll.u32 920167782, %v1510
        %v1526 = vshrl.u32 1326507024, %v1511
        %v1527 = vor.u32 %v1525, %v1526
        %vm1528 = vcmp.lt.s32.totalorder %v1509, 1
        %vm1529 = vcmp.lt.s32.totalorder %v1509, 2
        %vm1530 = vcmp.lt.s32.totalorder %v1509, 3
        %vm1531 = vcmp.lt.s32.totalorder %v1509, 4
        %v1532 = vsel %vm1528, %v1512, %v1515
        %v1533 = vsel %vm1531, %v1521, 2102212464
        %v1534 = vsel %vm1530, %v1518, %v1533
        %v1535 = vsel %vm1529, %v1532, %v1534
        %v1536 = vsel %vm1528, %v1515, %v1518
        %v1537 = vsel %vm1531, %v1524, 920167782
        %v1538 = vsel %vm1530, %v1521, %v1537
        %v1539 = vsel %vm1529, %v1536, %v1538
        %v1540 = vsel %vm1528, %v1518, %v1521
        %v1541 = vsel %vm1531, %v1527, 1326507024
        %v1542 = vsel %vm1530, %v1524, %v1541
        %v1543 = vsel %vm1529, %v1540, %v1542
        %v1544 = vshll.u32 %v1504, 8
        %v1545 = vmul.u32.u64.compose %v1544, %v1543
        %v1546 = vextract.low.u32 %v1545
        %v1547 = vextract.high.u32 %v1545
        %v1548 = vmul.u32.u64.compose %v1544, %v1539
        %v1549 = vextract.low.u32 %v1548
        %v1550 = vextract.high.u32 %v1548
        %v1551 = vmul.u32 %v1544, %v1535
        %v1552 = vadd.s32 %v1547, %v1549
        %vm1553 = vc.u32 %v1547, %v1549
        %v1554 = vadd.s32 %v1550, 1
        %v1555 = vsel %vm1553, %v1554, %v1550
        %v1556 = vadd.s32 %v1551, %v1555
        %v1557 = vadd.s32 %v1556, 536870912
        %v1558 = vshrl.u32 %v1557, 30
        %v1559 = vshll.u32 %v1558, 30
        %v1560 = vsub.s32 %v1556, %v1559
        %vm1561 = vcmp.lt.s32.totalorder %v1560, 0
        %v1562 = vsub.s32 0, %v1560
        %v1563 = vsel %vm1561, %v1562, %v1560
        %v1564 = vclz %v1563
        %v1565 = vsub.s32 %v1564, 2
        %vm1566 = vcmp.gt.s32.totalorder 0, %v1565
        %v1567 = vsel %vm1566, 0, %v1565
        %v1568 = vsub.s32 32, %v1567
        %v1569 = vshll.u32 %v1560, %v1567
        %v1570 = vshrl.u32 %v1552, %v1568
        %v1571 = vor.u32 %v1569, %v1570
        %v1572 = vsub.s32 4294967266, %v1567
        %v1573 = vadd.s32 %v1572, 127
        %v1574 = vshll.u32 %v1573, 23
        %v1575 = vor.u32 4788187, %v1574
        %v1576 = vand.u32 2147483647, %v1575
        %v1578 = vcvt.s32.f32 %v1571
        %v1579 = vmul.f32 %v1578, %v1576
        %v1580 = vxor.u32 %v1579, 2147483648
        %v1581 = vsel %vm1498, %v1580, %v1579
        %v1582 = vsub.s32 4, %v1558
        %v1583 = vsel %vm1498, %v1582, %v1558
        %v1584 = vsel %vm1497, %v224, %v1581
        %v1585 = vsel %vm1497, 0, %v1583
        %v1586 = vcosq.f32.pop %v1584
        %v1587 = vsinq.f32.pop %v1584
        %vm1588 = vweird.f32 %v224
        %v1589 = vand.u32 %v1585, 3
        %vm1590 = vcmp.lt.s32.totalorder %v1589, 2
        %vm1591 = vcmp.eq.s32.totalorder %v1589, 0
        %v1592 = vxor.u32 %v1587, 2147483648
        %v1593 = vsel %vm1591, %v1586, %v1592
        %vm1594 = vcmp.eq.s32.totalorder %v1589, 2
        %v1595 = vxor.u32 %v1586, 2147483648
        %v1596 = vsel %vm1594, %v1595, %v1587
        %v1597 = vsel %vm1590, %v1593, %v1596
        %v1598 = vsel %vm1588, nan, %v1597
        %v1599 = vand.u32 2147483647, %v225
        %vm1600 = vcmp.le.f32.partialorder %v1599, 0.7853982
        %vm1601 = vcmp.lt.s32.totalorder %v225, 0
        %v1602 = vand.u32 %v225, 2139095040
        %v1603 = vshrl.u32 %v1602, 23
        %v1604 = vsub.s32 %v1603, 127
        %v1605 = vand.u32 2147483647, %v225
        %v1606 = vand.u32 %v1605, 8388607
        %v1607 = vor.u32 %v1606, 8388608
        %v1608 = vsub.s32 0, %v1607
        %v1609 = vadd.s32 %v1604, 1
        %vm1610 = vcmp.gt.s32.totalorder %v1609, 0
        %v1611 = vsel %vm1610, %v1609, 0
        %v1612 = vshrl.u32 %v1611, 5
        %v1613 = vand.u32 %v1611, 31
        %v1614 = vsub.s32 32, %v1613
        %v1615 = vshrl.u32 683565275, %v1614
        %v1616 = vshll.u32 683565275, %v1613
        %v1617 = vshrl.u32 2475754826, %v1614
        %v1618 = vor.u32 %v1616, %v1617
        %v1619 = vshll.u32 2475754826, %v1613
        %v1620 = vshrl.u32 2131351028, %v1614
        %v1621 = vor.u32 %v1619, %v1620
        %v1622 = vshll.u32 2131351028, %v1613
        %v1623 = vshrl.u32 2102212464, %v1614
        %v1624 = vor.u32 %v1622, %v1623
        %v1625 = vshll.u32 2102212464, %v1613
        %v1626 = vshrl.u32 920167782, %v1614
        %v1627 = vor.u32 %v1625, %v1626
        %v1628 = vshll.u32 920167782, %v1613
        %v1629 = vshrl.u32 1326507024, %v1614
        %v1630 = vor.u32 %v1628, %v1629
        %vm1631 = vcmp.lt.s32.totalorder %v1612, 1
        %vm1632 = vcmp.lt.s32.totalorder %v1612, 2
        %vm1633 = vcmp.lt.s32.totalorder %v1612, 3
        %vm1634 = vcmp.lt.s32.totalorder %v1612, 4
        %v1635 = vsel %vm1631, %v1615, %v1618
        %v1636 = vsel %vm1634, %v1624, 2102212464
        %v1637 = vsel %vm1633, %v1621, %v1636
        %v1638 = vsel %vm1632, %v1635, %v1637
        %v1639 = vsel %vm1631, %v1618, %v1621
        %v1640 = vsel %vm1634, %v1627, 920167782
        %v1641 = vsel %vm1633, %v1624, %v1640
        %v1642 = vsel %vm1632, %v1639, %v1641
        %v1643 = vsel %vm1631, %v1621, %v1624
        %v1644 = vsel %vm1634, %v1630, 1326507024
        %v1645 = vsel %vm1633, %v1627, %v1644
        %v1646 = vsel %vm1632, %v1643, %v1645
        %v1647 = vshll.u32 %v1607, 8
        %v1648 = vmul.u32.u64.compose %v1647, %v1646
        %v1649 = vextract.low.u32 %v1648
        %v1650 = vextract.high.u32 %v1648
        %v1651 = vmul.u32.u64.compose %v1647, %v1642
        %v1652 = vextract.low.u32 %v1651
        %v1653 = vextract.high.u32 %v1651
        %v1654 = vmul.u32 %v1647, %v1638
        %v1655 = vadd.s32 %v1650, %v1652
        %vm1656 = vc.u32 %v1650, %v1652
        %v1657 = vadd.s32 %v1653, 1
        %v1658 = vsel %vm1656, %v1657, %v1653
        %v1659 = vadd.s32 %v1654, %v1658
        %v1660 = vadd.s32 %v1659, 536870912
        %v1661 = vshrl.u32 %v1660, 30
        %v1662 = vshll.u32 %v1661, 30
        %v1663 = vsub.s32 %v1659, %v1662
        %vm1664 = vcmp.lt.s32.totalorder %v1663, 0
        %v1665 = vsub.s32 0, %v1663
        %v1666 = vsel %vm1664, %v1665, %v1663
        %v1667 = vclz %v1666
        %v1668 = vsub.s32 %v1667, 2
        %vm1669 = vcmp.gt.s32.totalorder 0, %v1668
        %v1670 = vsel %vm1669, 0, %v1668
        %v1671 = vsub.s32 32, %v1670
        %v1672 = vshll.u32 %v1663, %v1670
        %v1673 = vshrl.u32 %v1655, %v1671
        %v1674 = vor.u32 %v1672, %v1673
        %v1675 = vsub.s32 4294967266, %v1670
        %v1676 = vadd.s32 %v1675, 127
        %v1677 = vshll.u32 %v1676, 23
        %v1678 = vor.u32 4788187, %v1677
        %v1679 = vand.u32 2147483647, %v1678
        %v1681 = vcvt.s32.f32 %v1674
        %v1682 = vmul.f32 %v1681, %v1679
        %v1683 = vxor.u32 %v1682, 2147483648
        %v1684 = vsel %vm1601, %v1683, %v1682
        %v1685 = vsub.s32 4, %v1661
        %v1686 = vsel %vm1601, %v1685, %v1661
        %v1687 = vsel %vm1600, %v225, %v1684
        %v1688 = vsel %vm1600, 0, %v1686
        %v1689 = vcosq.f32.pop %v1687
        %v1690 = vsinq.f32.pop %v1687
        %vm1691 = vweird.f32 %v225
        %v1692 = vand.u32 %v1688, 3
        %vm1693 = vcmp.lt.s32.totalorder %v1692, 2
        %vm1694 = vcmp.eq.s32.totalorder %v1692, 0
        %v1695 = vxor.u32 %v1690, 2147483648
        %v1696 = vsel %vm1694, %v1689, %v1695
        %vm1697 = vcmp.eq.s32.totalorder %v1692, 2
        %v1698 = vxor.u32 %v1689, 2147483648
        %v1699 = vsel %vm1697, %v1698, %v1690
        %v1700 = vsel %vm1693, %v1696, %v1699
        %v1701 = vsel %vm1691, nan, %v1700
        %v1702 = vand.u32 2147483647, %v226
        %vm1703 = vcmp.le.f32.partialorder %v1702, 0.7853982
        %vm1704 = vcmp.lt.s32.totalorder %v226, 0
        %v1705 = vand.u32 %v226, 2139095040
        %v1706 = vshrl.u32 %v1705, 23
        %v1707 = vsub.s32 %v1706, 127
        %v1708 = vand.u32 2147483647, %v226
        %v1709 = vand.u32 %v1708, 8388607
        %v1710 = vor.u32 %v1709, 8388608
        %v1711 = vsub.s32 0, %v1710
        %v1712 = vadd.s32 %v1707, 1
        %vm1713 = vcmp.gt.s32.totalorder %v1712, 0
        %v1714 = vsel %vm1713, %v1712, 0
        %v1715 = vshrl.u32 %v1714, 5
        %v1716 = vand.u32 %v1714, 31
        %v1717 = vsub.s32 32, %v1716
        %v1718 = vshrl.u32 683565275, %v1717
        %v1719 = vshll.u32 683565275, %v1716
        %v1720 = vshrl.u32 2475754826, %v1717
        %v1721 = vor.u32 %v1719, %v1720
        %v1722 = vshll.u32 2475754826, %v1716
        %v1723 = vshrl.u32 2131351028, %v1717
        %v1724 = vor.u32 %v1722, %v1723
        %v1725 = vshll.u32 2131351028, %v1716
        %v1726 = vshrl.u32 2102212464, %v1717
        %v1727 = vor.u32 %v1725, %v1726
        %v1728 = vshll.u32 2102212464, %v1716
        %v1729 = vshrl.u32 920167782, %v1717
        %v1730 = vor.u32 %v1728, %v1729
        %v1731 = vshll.u32 920167782, %v1716
        %v1732 = vshrl.u32 1326507024, %v1717
        %v1733 = vor.u32 %v1731, %v1732
        %vm1734 = vcmp.lt.s32.totalorder %v1715, 1
        %vm1735 = vcmp.lt.s32.totalorder %v1715, 2
        %vm1736 = vcmp.lt.s32.totalorder %v1715, 3
        %vm1737 = vcmp.lt.s32.totalorder %v1715, 4
        %v1738 = vsel %vm1734, %v1718, %v1721
        %v1739 = vsel %vm1737, %v1727, 2102212464
        %v1740 = vsel %vm1736, %v1724, %v1739
        %v1741 = vsel %vm1735, %v1738, %v1740
        %v1742 = vsel %vm1734, %v1721, %v1724
        %v1743 = vsel %vm1737, %v1730, 920167782
        %v1744 = vsel %vm1736, %v1727, %v1743
        %v1745 = vsel %vm1735, %v1742, %v1744
        %v1746 = vsel %vm1734, %v1724, %v1727
        %v1747 = vsel %vm1737, %v1733, 1326507024
        %v1748 = vsel %vm1736, %v1730, %v1747
        %v1749 = vsel %vm1735, %v1746, %v1748
        %v1750 = vshll.u32 %v1710, 8
        %v1751 = vmul.u32.u64.compose %v1750, %v1749
        %v1752 = vextract.low.u32 %v1751
        %v1753 = vextract.high.u32 %v1751
        %v1754 = vmul.u32.u64.compose %v1750, %v1745
        %v1755 = vextract.low.u32 %v1754
        %v1756 = vextract.high.u32 %v1754
        %v1757 = vmul.u32 %v1750, %v1741
        %v1758 = vadd.s32 %v1753, %v1755
        %vm1759 = vc.u32 %v1753, %v1755
        %v1760 = vadd.s32 %v1756, 1
        %v1761 = vsel %vm1759, %v1760, %v1756
        %v1762 = vadd.s32 %v1757, %v1761
        %v1763 = vadd.s32 %v1762, 536870912
        %v1764 = vshrl.u32 %v1763, 30
        %v1765 = vshll.u32 %v1764, 30
        %v1766 = vsub.s32 %v1762, %v1765
        %vm1767 = vcmp.lt.s32.totalorder %v1766, 0
        %v1768 = vsub.s32 0, %v1766
        %v1769 = vsel %vm1767, %v1768, %v1766
        %v1770 = vclz %v1769
        %v1771 = vsub.s32 %v1770, 2
        %vm1772 = vcmp.gt.s32.totalorder 0, %v1771
        %v1773 = vsel %vm1772, 0, %v1771
        %v1774 = vsub.s32 32, %v1773
        %v1775 = vshll.u32 %v1766, %v1773
        %v1776 = vshrl.u32 %v1758, %v1774
        %v1777 = vor.u32 %v1775, %v1776
        %v1778 = vsub.s32 4294967266, %v1773
        %v1779 = vadd.s32 %v1778, 127
        %v1780 = vshll.u32 %v1779, 23
        %v1781 = vor.u32 4788187, %v1780
        %v1782 = vand.u32 2147483647, %v1781
        %v1784 = vcvt.s32.f32 %v1777
        %v1785 = vmul.f32 %v1784, %v1782
        %v1786 = vxor.u32 %v1785, 2147483648
        %v1787 = vsel %vm1704, %v1786, %v1785
        %v1788 = vsub.s32 4, %v1764
        %v1789 = vsel %vm1704, %v1788, %v1764
        %v1790 = vsel %vm1703, %v226, %v1787
        %v1791 = vsel %vm1703, 0, %v1789
        %v1792 = vcosq.f32.pop %v1790
        %v1793 = vsinq.f32.pop %v1790
        %vm1794 = vweird.f32 %v226
        %v1795 = vand.u32 %v1791, 3
        %vm1796 = vcmp.lt.s32.totalorder %v1795, 2
        %vm1797 = vcmp.eq.s32.totalorder %v1795, 0
        %v1798 = vxor.u32 %v1793, 2147483648
        %v1799 = vsel %vm1797, %v1792, %v1798
        %vm1800 = vcmp.eq.s32.totalorder %v1795, 2
        %v1801 = vxor.u32 %v1792, 2147483648
        %v1802 = vsel %vm1800, %v1801, %v1793
        %v1803 = vsel %vm1796, %v1799, %v1802
        %v1804 = vsel %vm1794, nan, %v1803
        %v1805 = vand.u32 2147483647, %v227
        %vm1806 = vcmp.le.f32.partialorder %v1805, 0.7853982
        %vm1807 = vcmp.lt.s32.totalorder %v227, 0
        %v1808 = vand.u32 %v227, 2139095040
        %v1809 = vshrl.u32 %v1808, 23
        %v1810 = vsub.s32 %v1809, 127
        %v1811 = vand.u32 2147483647, %v227
        %v1812 = vand.u32 %v1811, 8388607
        %v1813 = vor.u32 %v1812, 8388608
        %v1814 = vsub.s32 0, %v1813
        %v1815 = vadd.s32 %v1810, 1
        %vm1816 = vcmp.gt.s32.totalorder %v1815, 0
        %v1817 = vsel %vm1816, %v1815, 0
        %v1818 = vshrl.u32 %v1817, 5
        %v1819 = vand.u32 %v1817, 31
        %v1820 = vsub.s32 32, %v1819
        %v1821 = vshrl.u32 683565275, %v1820
        %v1822 = vshll.u32 683565275, %v1819
        %v1823 = vshrl.u32 2475754826, %v1820
        %v1824 = vor.u32 %v1822, %v1823
        %v1825 = vshll.u32 2475754826, %v1819
        %v1826 = vshrl.u32 2131351028, %v1820
        %v1827 = vor.u32 %v1825, %v1826
        %v1828 = vshll.u32 2131351028, %v1819
        %v1829 = vshrl.u32 2102212464, %v1820
        %v1830 = vor.u32 %v1828, %v1829
        %v1831 = vshll.u32 2102212464, %v1819
        %v1832 = vshrl.u32 920167782, %v1820
        %v1833 = vor.u32 %v1831, %v1832
        %v1834 = vshll.u32 920167782, %v1819
        %v1835 = vshrl.u32 1326507024, %v1820
        %v1836 = vor.u32 %v1834, %v1835
        %vm1837 = vcmp.lt.s32.totalorder %v1818, 1
        %vm1838 = vcmp.lt.s32.totalorder %v1818, 2
        %vm1839 = vcmp.lt.s32.totalorder %v1818, 3
        %vm1840 = vcmp.lt.s32.totalorder %v1818, 4
        %v1841 = vsel %vm1837, %v1821, %v1824
        %v1842 = vsel %vm1840, %v1830, 2102212464
        %v1843 = vsel %vm1839, %v1827, %v1842
        %v1844 = vsel %vm1838, %v1841, %v1843
        %v1845 = vsel %vm1837, %v1824, %v1827
        %v1846 = vsel %vm1840, %v1833, 920167782
        %v1847 = vsel %vm1839, %v1830, %v1846
        %v1848 = vsel %vm1838, %v1845, %v1847
        %v1849 = vsel %vm1837, %v1827, %v1830
        %v1850 = vsel %vm1840, %v1836, 1326507024
        %v1851 = vsel %vm1839, %v1833, %v1850
        %v1852 = vsel %vm1838, %v1849, %v1851
        %v1853 = vshll.u32 %v1813, 8
        %v1854 = vmul.u32.u64.compose %v1853, %v1852
        %v1855 = vextract.low.u32 %v1854
        %v1856 = vextract.high.u32 %v1854
        %v1857 = vmul.u32.u64.compose %v1853, %v1848
        %v1858 = vextract.low.u32 %v1857
        %v1859 = vextract.high.u32 %v1857
        %v1860 = vmul.u32 %v1853, %v1844
        %v1861 = vadd.s32 %v1856, %v1858
        %vm1862 = vc.u32 %v1856, %v1858
        %v1863 = vadd.s32 %v1859, 1
        %v1864 = vsel %vm1862, %v1863, %v1859
        %v1865 = vadd.s32 %v1860, %v1864
        %v1866 = vadd.s32 %v1865, 536870912
        %v1867 = vshrl.u32 %v1866, 30
        %v1868 = vshll.u32 %v1867, 30
        %v1869 = vsub.s32 %v1865, %v1868
        %vm1870 = vcmp.lt.s32.totalorder %v1869, 0
        %v1871 = vsub.s32 0, %v1869
        %v1872 = vsel %vm1870, %v1871, %v1869
        %v1873 = vclz %v1872
        %v1874 = vsub.s32 %v1873, 2
        %vm1875 = vcmp.gt.s32.totalorder 0, %v1874
        %v1876 = vsel %vm1875, 0, %v1874
        %v1877 = vsub.s32 32, %v1876
        %v1878 = vshll.u32 %v1869, %v1876
        %v1879 = vshrl.u32 %v1861, %v1877
        %v1880 = vor.u32 %v1878, %v1879
        %v1881 = vsub.s32 4294967266, %v1876
        %v1882 = vadd.s32 %v1881, 127
        %v1883 = vshll.u32 %v1882, 23
        %v1884 = vor.u32 4788187, %v1883
        %v1885 = vand.u32 2147483647, %v1884
        %v1887 = vcvt.s32.f32 %v1880
        %v1888 = vmul.f32 %v1887, %v1885
        %v1889 = vxor.u32 %v1888, 2147483648
        %v1890 = vsel %vm1807, %v1889, %v1888
        %v1891 = vsub.s32 4, %v1867
        %v1892 = vsel %vm1807, %v1891, %v1867
        %v1893 = vsel %vm1806, %v227, %v1890
        %v1894 = vsel %vm1806, 0, %v1892
        %v1895 = vcosq.f32.pop %v1893
        %v1896 = vsinq.f32.pop %v1893
        %vm1897 = vweird.f32 %v227
        %v1898 = vand.u32 %v1894, 3
        %vm1899 = vcmp.lt.s32.totalorder %v1898, 2
        %vm1900 = vcmp.eq.s32.totalorder %v1898, 0
        %v1901 = vxor.u32 %v1896, 2147483648
        %v1902 = vsel %vm1900, %v1895, %v1901
        %vm1903 = vcmp.eq.s32.totalorder %v1898, 2
        %v1904 = vxor.u32 %v1895, 2147483648
        %v1905 = vsel %vm1903, %v1904, %v1896
        %v1906 = vsel %vm1899, %v1902, %v1905
        %v1907 = vsel %vm1897, nan, %v1906
        %v1908 = vand.u32 2147483647, %v228
        %vm1909 = vcmp.le.f32.partialorder %v1908, 0.7853982
        %vm1910 = vcmp.lt.s32.totalorder %v228, 0
        %v1911 = vand.u32 %v228, 2139095040
        %v1912 = vshrl.u32 %v1911, 23
        %v1913 = vsub.s32 %v1912, 127
        %v1914 = vand.u32 2147483647, %v228
        %v1915 = vand.u32 %v1914, 8388607
        %v1916 = vor.u32 %v1915, 8388608
        %v1917 = vsub.s32 0, %v1916
        %v1918 = vadd.s32 %v1913, 1
        %vm1919 = vcmp.gt.s32.totalorder %v1918, 0
        %v1920 = vsel %vm1919, %v1918, 0
        %v1921 = vshrl.u32 %v1920, 5
        %v1922 = vand.u32 %v1920, 31
        %v1923 = vsub.s32 32, %v1922
        %v1924 = vshrl.u32 683565275, %v1923
        %v1925 = vshll.u32 683565275, %v1922
        %v1926 = vshrl.u32 2475754826, %v1923
        %v1927 = vor.u32 %v1925, %v1926
        %v1928 = vshll.u32 2475754826, %v1922
        %v1929 = vshrl.u32 2131351028, %v1923
        %v1930 = vor.u32 %v1928, %v1929
        %v1931 = vshll.u32 2131351028, %v1922
        %v1932 = vshrl.u32 2102212464, %v1923
        %v1933 = vor.u32 %v1931, %v1932
        %v1934 = vshll.u32 2102212464, %v1922
        %v1935 = vshrl.u32 920167782, %v1923
        %v1936 = vor.u32 %v1934, %v1935
        %v1937 = vshll.u32 920167782, %v1922
        %v1938 = vshrl.u32 1326507024, %v1923
        %v1939 = vor.u32 %v1937, %v1938
        %vm1940 = vcmp.lt.s32.totalorder %v1921, 1
        %vm1941 = vcmp.lt.s32.totalorder %v1921, 2
        %vm1942 = vcmp.lt.s32.totalorder %v1921, 3
        %vm1943 = vcmp.lt.s32.totalorder %v1921, 4
        %v1944 = vsel %vm1940, %v1924, %v1927
        %v1945 = vsel %vm1943, %v1933, 2102212464
        %v1946 = vsel %vm1942, %v1930, %v1945
        %v1947 = vsel %vm1941, %v1944, %v1946
        %v1948 = vsel %vm1940, %v1927, %v1930
        %v1949 = vsel %vm1943, %v1936, 920167782
        %v1950 = vsel %vm1942, %v1933, %v1949
        %v1951 = vsel %vm1941, %v1948, %v1950
        %v1952 = vsel %vm1940, %v1930, %v1933
        %v1953 = vsel %vm1943, %v1939, 1326507024
        %v1954 = vsel %vm1942, %v1936, %v1953
        %v1955 = vsel %vm1941, %v1952, %v1954
        %v1956 = vshll.u32 %v1916, 8
        %v1957 = vmul.u32.u64.compose %v1956, %v1955
        %v1958 = vextract.low.u32 %v1957
        %v1959 = vextract.high.u32 %v1957
        %v1960 = vmul.u32.u64.compose %v1956, %v1951
        %v1961 = vextract.low.u32 %v1960
        %v1962 = vextract.high.u32 %v1960
        %v1963 = vmul.u32 %v1956, %v1947
        %v1964 = vadd.s32 %v1959, %v1961
        %vm1965 = vc.u32 %v1959, %v1961
        %v1966 = vadd.s32 %v1962, 1
        %v1967 = vsel %vm1965, %v1966, %v1962
        %v1968 = vadd.s32 %v1963, %v1967
        %v1969 = vadd.s32 %v1968, 536870912
        %v1970 = vshrl.u32 %v1969, 30
        %v1971 = vshll.u32 %v1970, 30
        %v1972 = vsub.s32 %v1968, %v1971
        %vm1973 = vcmp.lt.s32.totalorder %v1972, 0
        %v1974 = vsub.s32 0, %v1972
        %v1975 = vsel %vm1973, %v1974, %v1972
        %v1976 = vclz %v1975
        %v1977 = vsub.s32 %v1976, 2
        %vm1978 = vcmp.gt.s32.totalorder 0, %v1977
        %v1979 = vsel %vm1978, 0, %v1977
        %v1980 = vsub.s32 32, %v1979
        %v1981 = vshll.u32 %v1972, %v1979
        %v1982 = vshrl.u32 %v1964, %v1980
        %v1983 = vor.u32 %v1981, %v1982
        %v1984 = vsub.s32 4294967266, %v1979
        %v1985 = vadd.s32 %v1984, 127
        %v1986 = vshll.u32 %v1985, 23
        %v1987 = vor.u32 4788187, %v1986
        %v1988 = vand.u32 2147483647, %v1987
        %v1990 = vcvt.s32.f32 %v1983
        %v1991 = vmul.f32 %v1990, %v1988
        %v1992 = vxor.u32 %v1991, 2147483648
        %v1993 = vsel %vm1910, %v1992, %v1991
        %v1994 = vsub.s32 4, %v1970
        %v1995 = vsel %vm1910, %v1994, %v1970
        %v1996 = vsel %vm1909, %v228, %v1993
        %v1997 = vsel %vm1909, 0, %v1995
        %v1998 = vcosq.f32.pop %v1996
        %v1999 = vsinq.f32.pop %v1996
        %vm2000 = vweird.f32 %v228
        %v2001 = vand.u32 %v1997, 3
        %vm2002 = vcmp.lt.s32.totalorder %v2001, 2
        %vm2003 = vcmp.eq.s32.totalorder %v2001, 0
        %v2004 = vxor.u32 %v1999, 2147483648
        %v2005 = vsel %vm2003, %v1998, %v2004
        %vm2006 = vcmp.eq.s32.totalorder %v2001, 2
        %v2007 = vxor.u32 %v1998, 2147483648
        %v2008 = vsel %vm2006, %v2007, %v1999
        %v2009 = vsel %vm2002, %v2005, %v2008
        %v2010 = vsel %vm2000, nan, %v2009
        %v2011 = vand.u32 2147483647, %v229
        %vm2012 = vcmp.le.f32.partialorder %v2011, 0.7853982
        %vm2013 = vcmp.lt.s32.totalorder %v229, 0
        %v2014 = vand.u32 %v229, 2139095040
        %v2015 = vshrl.u32 %v2014, 23
        %v2016 = vsub.s32 %v2015, 127
        %v2017 = vand.u32 2147483647, %v229
        %v2018 = vand.u32 %v2017, 8388607
        %v2019 = vor.u32 %v2018, 8388608
        %v2020 = vsub.s32 0, %v2019
        %v2021 = vadd.s32 %v2016, 1
        %vm2022 = vcmp.gt.s32.totalorder %v2021, 0
        %v2023 = vsel %vm2022, %v2021, 0
        %v2024 = vshrl.u32 %v2023, 5
        %v2025 = vand.u32 %v2023, 31
        %v2026 = vsub.s32 32, %v2025
        %v2027 = vshrl.u32 683565275, %v2026
        %v2028 = vshll.u32 683565275, %v2025
        %v2029 = vshrl.u32 2475754826, %v2026
        %v2030 = vor.u32 %v2028, %v2029
        %v2031 = vshll.u32 2475754826, %v2025
        %v2032 = vshrl.u32 2131351028, %v2026
        %v2033 = vor.u32 %v2031, %v2032
        %v2034 = vshll.u32 2131351028, %v2025
        %v2035 = vshrl.u32 2102212464, %v2026
        %v2036 = vor.u32 %v2034, %v2035
        %v2037 = vshll.u32 2102212464, %v2025
        %v2038 = vshrl.u32 920167782, %v2026
        %v2039 = vor.u32 %v2037, %v2038
        %v2040 = vshll.u32 920167782, %v2025
        %v2041 = vshrl.u32 1326507024, %v2026
        %v2042 = vor.u32 %v2040, %v2041
        %vm2043 = vcmp.lt.s32.totalorder %v2024, 1
        %vm2044 = vcmp.lt.s32.totalorder %v2024, 2
        %vm2045 = vcmp.lt.s32.totalorder %v2024, 3
        %vm2046 = vcmp.lt.s32.totalorder %v2024, 4
        %v2047 = vsel %vm2043, %v2027, %v2030
        %v2048 = vsel %vm2046, %v2036, 2102212464
        %v2049 = vsel %vm2045, %v2033, %v2048
        %v2050 = vsel %vm2044, %v2047, %v2049
        %v2051 = vsel %vm2043, %v2030, %v2033
        %v2052 = vsel %vm2046, %v2039, 920167782
        %v2053 = vsel %vm2045, %v2036, %v2052
        %v2054 = vsel %vm2044, %v2051, %v2053
        %v2055 = vsel %vm2043, %v2033, %v2036
        %v2056 = vsel %vm2046, %v2042, 1326507024
        %v2057 = vsel %vm2045, %v2039, %v2056
        %v2058 = vsel %vm2044, %v2055, %v2057
        %v2059 = vshll.u32 %v2019, 8
        %v2060 = vmul.u32.u64.compose %v2059, %v2058
        %v2061 = vextract.low.u32 %v2060
        %v2062 = vextract.high.u32 %v2060
        %v2063 = vmul.u32.u64.compose %v2059, %v2054
        %v2064 = vextract.low.u32 %v2063
        %v2065 = vextract.high.u32 %v2063
        %v2066 = vmul.u32 %v2059, %v2050
        %v2067 = vadd.s32 %v2062, %v2064
        %vm2068 = vc.u32 %v2062, %v2064
        %v2069 = vadd.s32 %v2065, 1
        %v2070 = vsel %vm2068, %v2069, %v2065
        %v2071 = vadd.s32 %v2066, %v2070
        %v2072 = vadd.s32 %v2071, 536870912
        %v2073 = vshrl.u32 %v2072, 30
        %v2074 = vshll.u32 %v2073, 30
        %v2075 = vsub.s32 %v2071, %v2074
        %vm2076 = vcmp.lt.s32.totalorder %v2075, 0
        %v2077 = vsub.s32 0, %v2075
        %v2078 = vsel %vm2076, %v2077, %v2075
        %v2079 = vclz %v2078
        %v2080 = vsub.s32 %v2079, 2
        %vm2081 = vcmp.gt.s32.totalorder 0, %v2080
        %v2082 = vsel %vm2081, 0, %v2080
        %v2083 = vsub.s32 32, %v2082
        %v2084 = vshll.u32 %v2075, %v2082
        %v2085 = vshrl.u32 %v2067, %v2083
        %v2086 = vor.u32 %v2084, %v2085
        %v2087 = vsub.s32 4294967266, %v2082
        %v2088 = vadd.s32 %v2087, 127
        %v2089 = vshll.u32 %v2088, 23
        %v2090 = vor.u32 4788187, %v2089
        %v2091 = vand.u32 2147483647, %v2090
        %v2093 = vcvt.s32.f32 %v2086
        %v2094 = vmul.f32 %v2093, %v2091
        %v2095 = vxor.u32 %v2094, 2147483648
        %v2096 = vsel %vm2013, %v2095, %v2094
        %v2097 = vsub.s32 4, %v2073
        %v2098 = vsel %vm2013, %v2097, %v2073
        %v2099 = vsel %vm2012, %v229, %v2096
        %v2100 = vsel %vm2012, 0, %v2098
        %v2101 = vcosq.f32.pop %v2099
        %v2102 = vsinq.f32.pop %v2099
        %vm2103 = vweird.f32 %v229
        %v2104 = vand.u32 %v2100, 3
        %vm2105 = vcmp.lt.s32.totalorder %v2104, 2
        %vm2106 = vcmp.eq.s32.totalorder %v2104, 0
        %v2107 = vxor.u32 %v2102, 2147483648
        %v2108 = vsel %vm2106, %v2101, %v2107
        %vm2109 = vcmp.eq.s32.totalorder %v2104, 2
        %v2110 = vxor.u32 %v2101, 2147483648
        %v2111 = vsel %vm2109, %v2110, %v2102
        %v2112 = vsel %vm2105, %v2108, %v2111
        %v2113 = vsel %vm2103, nan, %v2112
        %v2114 = vand.u32 2147483647, %v230
        %vm2115 = vcmp.le.f32.partialorder %v2114, 0.7853982
        %vm2116 = vcmp.lt.s32.totalorder %v230, 0
        %v2117 = vand.u32 %v230, 2139095040
        %v2118 = vshrl.u32 %v2117, 23
        %v2119 = vsub.s32 %v2118, 127
        %v2120 = vand.u32 2147483647, %v230
        %v2121 = vand.u32 %v2120, 8388607
        %v2122 = vor.u32 %v2121, 8388608
        %v2123 = vsub.s32 0, %v2122
        %v2124 = vadd.s32 %v2119, 1
        %vm2125 = vcmp.gt.s32.totalorder %v2124, 0
        %v2126 = vsel %vm2125, %v2124, 0
        %v2127 = vshrl.u32 %v2126, 5
        %v2128 = vand.u32 %v2126, 31
        %v2129 = vsub.s32 32, %v2128
        %v2130 = vshrl.u32 683565275, %v2129
        %v2131 = vshll.u32 683565275, %v2128
        %v2132 = vshrl.u32 2475754826, %v2129
        %v2133 = vor.u32 %v2131, %v2132
        %v2134 = vshll.u32 2475754826, %v2128
        %v2135 = vshrl.u32 2131351028, %v2129
        %v2136 = vor.u32 %v2134, %v2135
        %v2137 = vshll.u32 2131351028, %v2128
        %v2138 = vshrl.u32 2102212464, %v2129
        %v2139 = vor.u32 %v2137, %v2138
        %v2140 = vshll.u32 2102212464, %v2128
        %v2141 = vshrl.u32 920167782, %v2129
        %v2142 = vor.u32 %v2140, %v2141
        %v2143 = vshll.u32 920167782, %v2128
        %v2144 = vshrl.u32 1326507024, %v2129
        %v2145 = vor.u32 %v2143, %v2144
        %vm2146 = vcmp.lt.s32.totalorder %v2127, 1
        %vm2147 = vcmp.lt.s32.totalorder %v2127, 2
        %vm2148 = vcmp.lt.s32.totalorder %v2127, 3
        %vm2149 = vcmp.lt.s32.totalorder %v2127, 4
        %v2150 = vsel %vm2146, %v2130, %v2133
        %v2151 = vsel %vm2149, %v2139, 2102212464
        %v2152 = vsel %vm2148, %v2136, %v2151
        %v2153 = vsel %vm2147, %v2150, %v2152
        %v2154 = vsel %vm2146, %v2133, %v2136
        %v2155 = vsel %vm2149, %v2142, 920167782
        %v2156 = vsel %vm2148, %v2139, %v2155
        %v2157 = vsel %vm2147, %v2154, %v2156
        %v2158 = vsel %vm2146, %v2136, %v2139
        %v2159 = vsel %vm2149, %v2145, 1326507024
        %v2160 = vsel %vm2148, %v2142, %v2159
        %v2161 = vsel %vm2147, %v2158, %v2160
        %v2162 = vshll.u32 %v2122, 8
        %v2163 = vmul.u32.u64.compose %v2162, %v2161
        %v2164 = vextract.low.u32 %v2163
        %v2165 = vextract.high.u32 %v2163
        %v2166 = vmul.u32.u64.compose %v2162, %v2157
        %v2167 = vextract.low.u32 %v2166
        %v2168 = vextract.high.u32 %v2166
        %v2169 = vmul.u32 %v2162, %v2153
        %v2170 = vadd.s32 %v2165, %v2167
        %vm2171 = vc.u32 %v2165, %v2167
        %v2172 = vadd.s32 %v2168, 1
        %v2173 = vsel %vm2171, %v2172, %v2168
        %v2174 = vadd.s32 %v2169, %v2173
        %v2175 = vadd.s32 %v2174, 536870912
        %v2176 = vshrl.u32 %v2175, 30
        %v2177 = vshll.u32 %v2176, 30
        %v2178 = vsub.s32 %v2174, %v2177
        %vm2179 = vcmp.lt.s32.totalorder %v2178, 0
        %v2180 = vsub.s32 0, %v2178
        %v2181 = vsel %vm2179, %v2180, %v2178
        %v2182 = vclz %v2181
        %v2183 = vsub.s32 %v2182, 2
        %vm2184 = vcmp.gt.s32.totalorder 0, %v2183
        %v2185 = vsel %vm2184, 0, %v2183
        %v2186 = vsub.s32 32, %v2185
        %v2187 = vshll.u32 %v2178, %v2185
        %v2188 = vshrl.u32 %v2170, %v2186
        %v2189 = vor.u32 %v2187, %v2188
        %v2190 = vsub.s32 4294967266, %v2185
        %v2191 = vadd.s32 %v2190, 127
        %v2192 = vshll.u32 %v2191, 23
        %v2193 = vor.u32 4788187, %v2192
        %v2194 = vand.u32 2147483647, %v2193
        %v2196 = vcvt.s32.f32 %v2189
        %v2197 = vmul.f32 %v2196, %v2194
        %v2198 = vxor.u32 %v2197, 2147483648
        %v2199 = vsel %vm2116, %v2198, %v2197
        %v2200 = vsub.s32 4, %v2176
        %v2201 = vsel %vm2116, %v2200, %v2176
        %v2202 = vsel %vm2115, %v230, %v2199
        %v2203 = vsel %vm2115, 0, %v2201
        %v2204 = vcosq.f32.pop %v2202
        %v2205 = vsinq.f32.pop %v2202
        %vm2206 = vweird.f32 %v230
        %v2207 = vand.u32 %v2203, 3
        %vm2208 = vcmp.lt.s32.totalorder %v2207, 2
        %vm2209 = vcmp.eq.s32.totalorder %v2207, 0
        %v2210 = vxor.u32 %v2205, 2147483648
        %v2211 = vsel %vm2209, %v2204, %v2210
        %vm2212 = vcmp.eq.s32.totalorder %v2207, 2
        %v2213 = vxor.u32 %v2204, 2147483648
        %v2214 = vsel %vm2212, %v2213, %v2205
        %v2215 = vsel %vm2208, %v2211, %v2214
        %v2216 = vsel %vm2206, nan, %v2215
        %v2217 = vand.u32 2147483647, %v231
        %vm2218 = vcmp.le.f32.partialorder %v2217, 0.7853982
        %vm2219 = vcmp.lt.s32.totalorder %v231, 0
        %v2220 = vand.u32 %v231, 2139095040
        %v2221 = vshrl.u32 %v2220, 23
        %v2222 = vsub.s32 %v2221, 127
        %v2223 = vand.u32 2147483647, %v231
        %v2224 = vand.u32 %v2223, 8388607
        %v2225 = vor.u32 %v2224, 8388608
        %v2226 = vsub.s32 0, %v2225
        %v2227 = vadd.s32 %v2222, 1
        %vm2228 = vcmp.gt.s32.totalorder %v2227, 0
        %v2229 = vsel %vm2228, %v2227, 0
        %v2230 = vshrl.u32 %v2229, 5
        %v2231 = vand.u32 %v2229, 31
        %v2232 = vsub.s32 32, %v2231
        %v2233 = vshrl.u32 683565275, %v2232
        %v2234 = vshll.u32 683565275, %v2231
        %v2235 = vshrl.u32 2475754826, %v2232
        %v2236 = vor.u32 %v2234, %v2235
        %v2237 = vshll.u32 2475754826, %v2231
        %v2238 = vshrl.u32 2131351028, %v2232
        %v2239 = vor.u32 %v2237, %v2238
        %v2240 = vshll.u32 2131351028, %v2231
        %v2241 = vshrl.u32 2102212464, %v2232
        %v2242 = vor.u32 %v2240, %v2241
        %v2243 = vshll.u32 2102212464, %v2231
        %v2244 = vshrl.u32 920167782, %v2232
        %v2245 = vor.u32 %v2243, %v2244
        %v2246 = vshll.u32 920167782, %v2231
        %v2247 = vshrl.u32 1326507024, %v2232
        %v2248 = vor.u32 %v2246, %v2247
        %vm2249 = vcmp.lt.s32.totalorder %v2230, 1
        %vm2250 = vcmp.lt.s32.totalorder %v2230, 2
        %vm2251 = vcmp.lt.s32.totalorder %v2230, 3
        %vm2252 = vcmp.lt.s32.totalorder %v2230, 4
        %v2253 = vsel %vm2249, %v2233, %v2236
        %v2254 = vsel %vm2252, %v2242, 2102212464
        %v2255 = vsel %vm2251, %v2239, %v2254
        %v2256 = vsel %vm2250, %v2253, %v2255
        %v2257 = vsel %vm2249, %v2236, %v2239
        %v2258 = vsel %vm2252, %v2245, 920167782
        %v2259 = vsel %vm2251, %v2242, %v2258
        %v2260 = vsel %vm2250, %v2257, %v2259
        %v2261 = vsel %vm2249, %v2239, %v2242
        %v2262 = vsel %vm2252, %v2248, 1326507024
        %v2263 = vsel %vm2251, %v2245, %v2262
        %v2264 = vsel %vm2250, %v2261, %v2263
        %v2265 = vshll.u32 %v2225, 8
        %v2266 = vmul.u32.u64.compose %v2265, %v2264
        %v2267 = vextract.low.u32 %v2266
        %v2268 = vextract.high.u32 %v2266
        %v2269 = vmul.u32.u64.compose %v2265, %v2260
        %v2270 = vextract.low.u32 %v2269
        %v2271 = vextract.high.u32 %v2269
        %v2272 = vmul.u32 %v2265, %v2256
        %v2273 = vadd.s32 %v2268, %v2270
        %vm2274 = vc.u32 %v2268, %v2270
        %v2275 = vadd.s32 %v2271, 1
        %v2276 = vsel %vm2274, %v2275, %v2271
        %v2277 = vadd.s32 %v2272, %v2276
        %v2278 = vadd.s32 %v2277, 536870912
        %v2279 = vshrl.u32 %v2278, 30
        %v2280 = vshll.u32 %v2279, 30
        %v2281 = vsub.s32 %v2277, %v2280
        %vm2282 = vcmp.lt.s32.totalorder %v2281, 0
        %v2283 = vsub.s32 0, %v2281
        %v2284 = vsel %vm2282, %v2283, %v2281
        %v2285 = vclz %v2284
        %v2286 = vsub.s32 %v2285, 2
        %vm2287 = vcmp.gt.s32.totalorder 0, %v2286
        %v2288 = vsel %vm2287, 0, %v2286
        %v2289 = vsub.s32 32, %v2288
        %v2290 = vshll.u32 %v2281, %v2288
        %v2291 = vshrl.u32 %v2273, %v2289
        %v2292 = vor.u32 %v2290, %v2291
        %v2293 = vsub.s32 4294967266, %v2288
        %v2294 = vadd.s32 %v2293, 127
        %v2295 = vshll.u32 %v2294, 23
        %v2296 = vor.u32 4788187, %v2295
        %v2297 = vand.u32 2147483647, %v2296
        %v2299 = vcvt.s32.f32 %v2292
        %v2300 = vmul.f32 %v2299, %v2297
        %v2301 = vxor.u32 %v2300, 2147483648
        %v2302 = vsel %vm2219, %v2301, %v2300
        %v2303 = vsub.s32 4, %v2279
        %v2304 = vsel %vm2219, %v2303, %v2279
        %v2305 = vsel %vm2218, %v231, %v2302
        %v2306 = vsel %vm2218, 0, %v2304
        %v2307 = vcosq.f32.pop %v2305
        %v2308 = vsinq.f32.pop %v2305
        %vm2309 = vweird.f32 %v231
        %v2310 = vand.u32 %v2306, 3
        %vm2311 = vcmp.lt.s32.totalorder %v2310, 2
        %vm2312 = vcmp.eq.s32.totalorder %v2310, 0
        %v2313 = vxor.u32 %v2308, 2147483648
        %v2314 = vsel %vm2312, %v2307, %v2313
        %vm2315 = vcmp.eq.s32.totalorder %v2310, 2
        %v2316 = vxor.u32 %v2307, 2147483648
        %v2317 = vsel %vm2315, %v2316, %v2308
        %v2318 = vsel %vm2311, %v2314, %v2317
        %v2319 = vsel %vm2309, nan, %v2318
        %v2320 = vand.u32 2147483647, %v232
        %vm2321 = vcmp.le.f32.partialorder %v2320, 0.7853982
        %vm2322 = vcmp.lt.s32.totalorder %v232, 0
        %v2323 = vand.u32 %v232, 2139095040
        %v2324 = vshrl.u32 %v2323, 23
        %v2325 = vsub.s32 %v2324, 127
        %v2326 = vand.u32 2147483647, %v232
        %v2327 = vand.u32 %v2326, 8388607
        %v2328 = vor.u32 %v2327, 8388608
        %v2329 = vsub.s32 0, %v2328
        %v2330 = vadd.s32 %v2325, 1
        %vm2331 = vcmp.gt.s32.totalorder %v2330, 0
        %v2332 = vsel %vm2331, %v2330, 0
        %v2333 = vshrl.u32 %v2332, 5
        %v2334 = vand.u32 %v2332, 31
        %v2335 = vsub.s32 32, %v2334
        %v2336 = vshrl.u32 683565275, %v2335
        %v2337 = vshll.u32 683565275, %v2334
        %v2338 = vshrl.u32 2475754826, %v2335
        %v2339 = vor.u32 %v2337, %v2338
        %v2340 = vshll.u32 2475754826, %v2334
        %v2341 = vshrl.u32 2131351028, %v2335
        %v2342 = vor.u32 %v2340, %v2341
        %v2343 = vshll.u32 2131351028, %v2334
        %v2344 = vshrl.u32 2102212464, %v2335
        %v2345 = vor.u32 %v2343, %v2344
        %v2346 = vshll.u32 2102212464, %v2334
        %v2347 = vshrl.u32 920167782, %v2335
        %v2348 = vor.u32 %v2346, %v2347
        %v2349 = vshll.u32 920167782, %v2334
        %v2350 = vshrl.u32 1326507024, %v2335
        %v2351 = vor.u32 %v2349, %v2350
        %vm2352 = vcmp.lt.s32.totalorder %v2333, 1
        %vm2353 = vcmp.lt.s32.totalorder %v2333, 2
        %vm2354 = vcmp.lt.s32.totalorder %v2333, 3
        %vm2355 = vcmp.lt.s32.totalorder %v2333, 4
        %v2356 = vsel %vm2352, %v2336, %v2339
        %v2357 = vsel %vm2355, %v2345, 2102212464
        %v2358 = vsel %vm2354, %v2342, %v2357
        %v2359 = vsel %vm2353, %v2356, %v2358
        %v2360 = vsel %vm2352, %v2339, %v2342
        %v2361 = vsel %vm2355, %v2348, 920167782
        %v2362 = vsel %vm2354, %v2345, %v2361
        %v2363 = vsel %vm2353, %v2360, %v2362
        %v2364 = vsel %vm2352, %v2342, %v2345
        %v2365 = vsel %vm2355, %v2351, 1326507024
        %v2366 = vsel %vm2354, %v2348, %v2365
        %v2367 = vsel %vm2353, %v2364, %v2366
        %v2368 = vshll.u32 %v2328, 8
        %v2369 = vmul.u32.u64.compose %v2368, %v2367
        %v2370 = vextract.low.u32 %v2369
        %v2371 = vextract.high.u32 %v2369
        %v2372 = vmul.u32.u64.compose %v2368, %v2363
        %v2373 = vextract.low.u32 %v2372
        %v2374 = vextract.high.u32 %v2372
        %v2375 = vmul.u32 %v2368, %v2359
        %v2376 = vadd.s32 %v2371, %v2373
        %vm2377 = vc.u32 %v2371, %v2373
        %v2378 = vadd.s32 %v2374, 1
        %v2379 = vsel %vm2377, %v2378, %v2374
        %v2380 = vadd.s32 %v2375, %v2379
        %v2381 = vadd.s32 %v2380, 536870912
        %v2382 = vshrl.u32 %v2381, 30
        %v2383 = vshll.u32 %v2382, 30
        %v2384 = vsub.s32 %v2380, %v2383
        %vm2385 = vcmp.lt.s32.totalorder %v2384, 0
        %v2386 = vsub.s32 0, %v2384
        %v2387 = vsel %vm2385, %v2386, %v2384
        %v2388 = vclz %v2387
        %v2389 = vsub.s32 %v2388, 2
        %vm2390 = vcmp.gt.s32.totalorder 0, %v2389
        %v2391 = vsel %vm2390, 0, %v2389
        %v2392 = vsub.s32 32, %v2391
        %v2393 = vshll.u32 %v2384, %v2391
        %v2394 = vshrl.u32 %v2376, %v2392
        %v2395 = vor.u32 %v2393, %v2394
        %v2396 = vsub.s32 4294967266, %v2391
        %v2397 = vadd.s32 %v2396, 127
        %v2398 = vshll.u32 %v2397, 23
        %v2399 = vor.u32 4788187, %v2398
        %v2400 = vand.u32 2147483647, %v2399
        %v2402 = vcvt.s32.f32 %v2395
        %v2403 = vmul.f32 %v2402, %v2400
        %v2404 = vxor.u32 %v2403, 2147483648
        %v2405 = vsel %vm2322, %v2404, %v2403
        %v2406 = vsub.s32 4, %v2382
        %v2407 = vsel %vm2322, %v2406, %v2382
        %v2408 = vsel %vm2321, %v232, %v2405
        %v2409 = vsel %vm2321, 0, %v2407
        %v2410 = vcosq.f32.pop %v2408
        %v2411 = vsinq.f32.pop %v2408
        %vm2412 = vweird.f32 %v232
        %v2413 = vand.u32 %v2409, 3
        %vm2414 = vcmp.lt.s32.totalorder %v2413, 2
        %vm2415 = vcmp.eq.s32.totalorder %v2413, 0
        %v2416 = vxor.u32 %v2411, 2147483648
        %v2417 = vsel %vm2415, %v2410, %v2416
        %vm2418 = vcmp.eq.s32.totalorder %v2413, 2
        %v2419 = vxor.u32 %v2410, 2147483648
        %v2420 = vsel %vm2418, %v2419, %v2411
        %v2421 = vsel %vm2414, %v2417, %v2420
        %v2422 = vsel %vm2412, nan, %v2421
        %v2423 = vand.u32 2147483647, %v233
        %vm2424 = vcmp.le.f32.partialorder %v2423, 0.7853982
        %vm2425 = vcmp.lt.s32.totalorder %v233, 0
        %v2426 = vand.u32 %v233, 2139095040
        %v2427 = vshrl.u32 %v2426, 23
        %v2428 = vsub.s32 %v2427, 127
        %v2429 = vand.u32 2147483647, %v233
        %v2430 = vand.u32 %v2429, 8388607
        %v2431 = vor.u32 %v2430, 8388608
        %v2432 = vsub.s32 0, %v2431
        %v2433 = vadd.s32 %v2428, 1
        %vm2434 = vcmp.gt.s32.totalorder %v2433, 0
        %v2435 = vsel %vm2434, %v2433, 0
        %v2436 = vshrl.u32 %v2435, 5
        %v2437 = vand.u32 %v2435, 31
        %v2438 = vsub.s32 32, %v2437
        %v2439 = vshrl.u32 683565275, %v2438
        %v2440 = vshll.u32 683565275, %v2437
        %v2441 = vshrl.u32 2475754826, %v2438
        %v2442 = vor.u32 %v2440, %v2441
        %v2443 = vshll.u32 2475754826, %v2437
        %v2444 = vshrl.u32 2131351028, %v2438
        %v2445 = vor.u32 %v2443, %v2444
        %v2446 = vshll.u32 2131351028, %v2437
        %v2447 = vshrl.u32 2102212464, %v2438
        %v2448 = vor.u32 %v2446, %v2447
        %v2449 = vshll.u32 2102212464, %v2437
        %v2450 = vshrl.u32 920167782, %v2438
        %v2451 = vor.u32 %v2449, %v2450
        %v2452 = vshll.u32 920167782, %v2437
        %v2453 = vshrl.u32 1326507024, %v2438
        %v2454 = vor.u32 %v2452, %v2453
        %vm2455 = vcmp.lt.s32.totalorder %v2436, 1
        %vm2456 = vcmp.lt.s32.totalorder %v2436, 2
        %vm2457 = vcmp.lt.s32.totalorder %v2436, 3
        %vm2458 = vcmp.lt.s32.totalorder %v2436, 4
        %v2459 = vsel %vm2455, %v2439, %v2442
        %v2460 = vsel %vm2458, %v2448, 2102212464
        %v2461 = vsel %vm2457, %v2445, %v2460
        %v2462 = vsel %vm2456, %v2459, %v2461
        %v2463 = vsel %vm2455, %v2442, %v2445
        %v2464 = vsel %vm2458, %v2451, 920167782
        %v2465 = vsel %vm2457, %v2448, %v2464
        %v2466 = vsel %vm2456, %v2463, %v2465
        %v2467 = vsel %vm2455, %v2445, %v2448
        %v2468 = vsel %vm2458, %v2454, 1326507024
        %v2469 = vsel %vm2457, %v2451, %v2468
        %v2470 = vsel %vm2456, %v2467, %v2469
        %v2471 = vshll.u32 %v2431, 8
        %v2472 = vmul.u32.u64.compose %v2471, %v2470
        %v2473 = vextract.low.u32 %v2472
        %v2474 = vextract.high.u32 %v2472
        %v2475 = vmul.u32.u64.compose %v2471, %v2466
        %v2476 = vextract.low.u32 %v2475
        %v2477 = vextract.high.u32 %v2475
        %v2478 = vmul.u32 %v2471, %v2462
        %v2479 = vadd.s32 %v2474, %v2476
        %vm2480 = vc.u32 %v2474, %v2476
        %v2481 = vadd.s32 %v2477, 1
        %v2482 = vsel %vm2480, %v2481, %v2477
        %v2483 = vadd.s32 %v2478, %v2482
        %v2484 = vadd.s32 %v2483, 536870912
        %v2485 = vshrl.u32 %v2484, 30
        %v2486 = vshll.u32 %v2485, 30
        %v2487 = vsub.s32 %v2483, %v2486
        %vm2488 = vcmp.lt.s32.totalorder %v2487, 0
        %v2489 = vsub.s32 0, %v2487
        %v2490 = vsel %vm2488, %v2489, %v2487
        %v2491 = vclz %v2490
        %v2492 = vsub.s32 %v2491, 2
        %vm2493 = vcmp.gt.s32.totalorder 0, %v2492
        %v2494 = vsel %vm2493, 0, %v2492
        %v2495 = vsub.s32 32, %v2494
        %v2496 = vshll.u32 %v2487, %v2494
        %v2497 = vshrl.u32 %v2479, %v2495
        %v2498 = vor.u32 %v2496, %v2497
        %v2499 = vsub.s32 4294967266, %v2494
        %v2500 = vadd.s32 %v2499, 127
        %v2501 = vshll.u32 %v2500, 23
        %v2502 = vor.u32 4788187, %v2501
        %v2503 = vand.u32 2147483647, %v2502
        %v2505 = vcvt.s32.f32 %v2498
        %v2506 = vmul.f32 %v2505, %v2503
        %v2507 = vxor.u32 %v2506, 2147483648
        %v2508 = vsel %vm2425, %v2507, %v2506
        %v2509 = vsub.s32 4, %v2485
        %v2510 = vsel %vm2425, %v2509, %v2485
        %v2511 = vsel %vm2424, %v233, %v2508
        %v2512 = vsel %vm2424, 0, %v2510
        %v2513 = vcosq.f32.pop %v2511
        %v2514 = vsinq.f32.pop %v2511
        %vm2515 = vweird.f32 %v233
        %v2516 = vand.u32 %v2512, 3
        %vm2517 = vcmp.lt.s32.totalorder %v2516, 2
        %vm2518 = vcmp.eq.s32.totalorder %v2516, 0
        %v2519 = vxor.u32 %v2514, 2147483648
        %v2520 = vsel %vm2518, %v2513, %v2519
        %vm2521 = vcmp.eq.s32.totalorder %v2516, 2
        %v2522 = vxor.u32 %v2513, 2147483648
        %v2523 = vsel %vm2521, %v2522, %v2514
        %v2524 = vsel %vm2517, %v2520, %v2523
        %v2525 = vsel %vm2515, nan, %v2524
        %v2526 = vand.u32 2147483647, %v234
        %vm2527 = vcmp.le.f32.partialorder %v2526, 0.7853982
        %vm2528 = vcmp.lt.s32.totalorder %v234, 0
        %v2529 = vand.u32 %v234, 2139095040
        %v2530 = vshrl.u32 %v2529, 23
        %v2531 = vsub.s32 %v2530, 127
        %v2532 = vand.u32 2147483647, %v234
        %v2533 = vand.u32 %v2532, 8388607
        %v2534 = vor.u32 %v2533, 8388608
        %v2535 = vsub.s32 0, %v2534
        %v2536 = vadd.s32 %v2531, 1
        %vm2537 = vcmp.gt.s32.totalorder %v2536, 0
        %v2538 = vsel %vm2537, %v2536, 0
        %v2539 = vshrl.u32 %v2538, 5
        %v2540 = vand.u32 %v2538, 31
        %v2541 = vsub.s32 32, %v2540
        %v2542 = vshrl.u32 683565275, %v2541
        %v2543 = vshll.u32 683565275, %v2540
        %v2544 = vshrl.u32 2475754826, %v2541
        %v2545 = vor.u32 %v2543, %v2544
        %v2546 = vshll.u32 2475754826, %v2540
        %v2547 = vshrl.u32 2131351028, %v2541
        %v2548 = vor.u32 %v2546, %v2547
        %v2549 = vshll.u32 2131351028, %v2540
        %v2550 = vshrl.u32 2102212464, %v2541
        %v2551 = vor.u32 %v2549, %v2550
        %v2552 = vshll.u32 2102212464, %v2540
        %v2553 = vshrl.u32 920167782, %v2541
        %v2554 = vor.u32 %v2552, %v2553
        %v2555 = vshll.u32 920167782, %v2540
        %v2556 = vshrl.u32 1326507024, %v2541
        %v2557 = vor.u32 %v2555, %v2556
        %vm2558 = vcmp.lt.s32.totalorder %v2539, 1
        %vm2559 = vcmp.lt.s32.totalorder %v2539, 2
        %vm2560 = vcmp.lt.s32.totalorder %v2539, 3
        %vm2561 = vcmp.lt.s32.totalorder %v2539, 4
        %v2562 = vsel %vm2558, %v2542, %v2545
        %v2563 = vsel %vm2561, %v2551, 2102212464
        %v2564 = vsel %vm2560, %v2548, %v2563
        %v2565 = vsel %vm2559, %v2562, %v2564
        %v2566 = vsel %vm2558, %v2545, %v2548
        %v2567 = vsel %vm2561, %v2554, 920167782
        %v2568 = vsel %vm2560, %v2551, %v2567
        %v2569 = vsel %vm2559, %v2566, %v2568
        %v2570 = vsel %vm2558, %v2548, %v2551
        %v2571 = vsel %vm2561, %v2557, 1326507024
        %v2572 = vsel %vm2560, %v2554, %v2571
        %v2573 = vsel %vm2559, %v2570, %v2572
        %v2574 = vshll.u32 %v2534, 8
        %v2575 = vmul.u32.u64.compose %v2574, %v2573
        %v2576 = vextract.low.u32 %v2575
        %v2577 = vextract.high.u32 %v2575
        %v2578 = vmul.u32.u64.compose %v2574, %v2569
        %v2579 = vextract.low.u32 %v2578
        %v2580 = vextract.high.u32 %v2578
        %v2581 = vmul.u32 %v2574, %v2565
        %v2582 = vadd.s32 %v2577, %v2579
        %vm2583 = vc.u32 %v2577, %v2579
        %v2584 = vadd.s32 %v2580, 1
        %v2585 = vsel %vm2583, %v2584, %v2580
        %v2586 = vadd.s32 %v2581, %v2585
        %v2587 = vadd.s32 %v2586, 536870912
        %v2588 = vshrl.u32 %v2587, 30
        %v2589 = vshll.u32 %v2588, 30
        %v2590 = vsub.s32 %v2586, %v2589
        %vm2591 = vcmp.lt.s32.totalorder %v2590, 0
        %v2592 = vsub.s32 0, %v2590
        %v2593 = vsel %vm2591, %v2592, %v2590
        %v2594 = vclz %v2593
        %v2595 = vsub.s32 %v2594, 2
        %vm2596 = vcmp.gt.s32.totalorder 0, %v2595
        %v2597 = vsel %vm2596, 0, %v2595
        %v2598 = vsub.s32 32, %v2597
        %v2599 = vshll.u32 %v2590, %v2597
        %v2600 = vshrl.u32 %v2582, %v2598
        %v2601 = vor.u32 %v2599, %v2600
        %v2602 = vsub.s32 4294967266, %v2597
        %v2603 = vadd.s32 %v2602, 127
        %v2604 = vshll.u32 %v2603, 23
        %v2605 = vor.u32 4788187, %v2604
        %v2606 = vand.u32 2147483647, %v2605
        %v2608 = vcvt.s32.f32 %v2601
        %v2609 = vmul.f32 %v2608, %v2606
        %v2610 = vxor.u32 %v2609, 2147483648
        %v2611 = vsel %vm2528, %v2610, %v2609
        %v2612 = vsub.s32 4, %v2588
        %v2613 = vsel %vm2528, %v2612, %v2588
        %v2614 = vsel %vm2527, %v234, %v2611
        %v2615 = vsel %vm2527, 0, %v2613
        %v2616 = vcosq.f32.pop %v2614
        %v2617 = vsinq.f32.pop %v2614
        %vm2618 = vweird.f32 %v234
        %v2619 = vand.u32 %v2615, 3
        %vm2620 = vcmp.lt.s32.totalorder %v2619, 2
        %vm2621 = vcmp.eq.s32.totalorder %v2619, 0
        %v2622 = vxor.u32 %v2617, 2147483648
        %v2623 = vsel %vm2621, %v2616, %v2622
        %vm2624 = vcmp.eq.s32.totalorder %v2619, 2
        %v2625 = vxor.u32 %v2616, 2147483648
        %v2626 = vsel %vm2624, %v2625, %v2617
        %v2627 = vsel %vm2620, %v2623, %v2626
        %v2628 = vsel %vm2618, nan, %v2627
        %v2629 = vand.u32 2147483647, %v235
        %vm2630 = vcmp.le.f32.partialorder %v2629, 0.7853982
        %vm2631 = vcmp.lt.s32.totalorder %v235, 0
        %v2632 = vand.u32 %v235, 2139095040
        %v2633 = vshrl.u32 %v2632, 23
        %v2634 = vsub.s32 %v2633, 127
        %v2635 = vand.u32 2147483647, %v235
        %v2636 = vand.u32 %v2635, 8388607
        %v2637 = vor.u32 %v2636, 8388608
        %v2638 = vsub.s32 0, %v2637
        %v2639 = vadd.s32 %v2634, 1
        %vm2640 = vcmp.gt.s32.totalorder %v2639, 0
        %v2641 = vsel %vm2640, %v2639, 0
        %v2642 = vshrl.u32 %v2641, 5
        %v2643 = vand.u32 %v2641, 31
        %v2644 = vsub.s32 32, %v2643
        %v2645 = vshrl.u32 683565275, %v2644
        %v2646 = vshll.u32 683565275, %v2643
        %v2647 = vshrl.u32 2475754826, %v2644
        %v2648 = vor.u32 %v2646, %v2647
        %v2649 = vshll.u32 2475754826, %v2643
        %v2650 = vshrl.u32 2131351028, %v2644
        %v2651 = vor.u32 %v2649, %v2650
        %v2652 = vshll.u32 2131351028, %v2643
        %v2653 = vshrl.u32 2102212464, %v2644
        %v2654 = vor.u32 %v2652, %v2653
        %v2655 = vshll.u32 2102212464, %v2643
        %v2656 = vshrl.u32 920167782, %v2644
        %v2657 = vor.u32 %v2655, %v2656
        %v2658 = vshll.u32 920167782, %v2643
        %v2659 = vshrl.u32 1326507024, %v2644
        %v2660 = vor.u32 %v2658, %v2659
        %vm2661 = vcmp.lt.s32.totalorder %v2642, 1
        %vm2662 = vcmp.lt.s32.totalorder %v2642, 2
        %vm2663 = vcmp.lt.s32.totalorder %v2642, 3
        %vm2664 = vcmp.lt.s32.totalorder %v2642, 4
        %v2665 = vsel %vm2661, %v2645, %v2648
        %v2666 = vsel %vm2664, %v2654, 2102212464
        %v2667 = vsel %vm2663, %v2651, %v2666
        %v2668 = vsel %vm2662, %v2665, %v2667
        %v2669 = vsel %vm2661, %v2648, %v2651
        %v2670 = vsel %vm2664, %v2657, 920167782
        %v2671 = vsel %vm2663, %v2654, %v2670
        %v2672 = vsel %vm2662, %v2669, %v2671
        %v2673 = vsel %vm2661, %v2651, %v2654
        %v2674 = vsel %vm2664, %v2660, 1326507024
        %v2675 = vsel %vm2663, %v2657, %v2674
        %v2676 = vsel %vm2662, %v2673, %v2675
        %v2677 = vshll.u32 %v2637, 8
        %v2678 = vmul.u32.u64.compose %v2677, %v2676
        %v2679 = vextract.low.u32 %v2678
        %v2680 = vextract.high.u32 %v2678
        %v2681 = vmul.u32.u64.compose %v2677, %v2672
        %v2682 = vextract.low.u32 %v2681
        %v2683 = vextract.high.u32 %v2681
        %v2684 = vmul.u32 %v2677, %v2668
        %v2685 = vadd.s32 %v2680, %v2682
        %vm2686 = vc.u32 %v2680, %v2682
        %v2687 = vadd.s32 %v2683, 1
        %v2688 = vsel %vm2686, %v2687, %v2683
        %v2689 = vadd.s32 %v2684, %v2688
        %v2690 = vadd.s32 %v2689, 536870912
        %v2691 = vshrl.u32 %v2690, 30
        %v2692 = vshll.u32 %v2691, 30
        %v2693 = vsub.s32 %v2689, %v2692
        %vm2694 = vcmp.lt.s32.totalorder %v2693, 0
        %v2695 = vsub.s32 0, %v2693
        %v2696 = vsel %vm2694, %v2695, %v2693
        %v2697 = vclz %v2696
        %v2698 = vsub.s32 %v2697, 2
        %vm2699 = vcmp.gt.s32.totalorder 0, %v2698
        %v2700 = vsel %vm2699, 0, %v2698
        %v2701 = vsub.s32 32, %v2700
        %v2702 = vshll.u32 %v2693, %v2700
        %v2703 = vshrl.u32 %v2685, %v2701
        %v2704 = vor.u32 %v2702, %v2703
        %v2705 = vsub.s32 4294967266, %v2700
        %v2706 = vadd.s32 %v2705, 127
        %v2707 = vshll.u32 %v2706, 23
        %v2708 = vor.u32 4788187, %v2707
        %v2709 = vand.u32 2147483647, %v2708
        %v2711 = vcvt.s32.f32 %v2704
        %v2712 = vmul.f32 %v2711, %v2709
        %v2713 = vxor.u32 %v2712, 2147483648
        %v2714 = vsel %vm2631, %v2713, %v2712
        %v2715 = vsub.s32 4, %v2691
        %v2716 = vsel %vm2631, %v2715, %v2691
        %v2717 = vsel %vm2630, %v235, %v2714
        %v2718 = vsel %vm2630, 0, %v2716
        %v2719 = vcosq.f32.pop %v2717
        %v2720 = vsinq.f32.pop %v2717
        %vm2721 = vweird.f32 %v235
        %v2722 = vand.u32 %v2718, 3
        %vm2723 = vcmp.lt.s32.totalorder %v2722, 2
        %vm2724 = vcmp.eq.s32.totalorder %v2722, 0
        %v2725 = vxor.u32 %v2720, 2147483648
        %v2726 = vsel %vm2724, %v2719, %v2725
        %vm2727 = vcmp.eq.s32.totalorder %v2722, 2
        %v2728 = vxor.u32 %v2719, 2147483648
        %v2729 = vsel %vm2727, %v2728, %v2720
        %v2730 = vsel %vm2723, %v2726, %v2729
        %v2731 = vsel %vm2721, nan, %v2730
        %2732 = vst [vmem:[%s137 + $0x8] sm:$0xff] %v1598
        %2733 = vst [vmem:[%s137 + $0x18] sm:$0xff] %v1701
        %2734 = vst [vmem:[%s137 + $0x28] sm:$0xff] %v1804
        %2735 = vst [vmem:[%s137 + $0x38] sm:$0xff] %v1907
        %2736 = vst [vmem:[%s137 + $0x48] sm:$0xff] %v2010
        %2737 = vst [vmem:[%s137 + $0x58] sm:$0xff] %v2113
        %2738 = vst [vmem:[%s137 + $0x68] sm:$0xff] %v2216
        %2739 = vst [vmem:[%s137 + $0x78] sm:$0xff] %v2319
        %2740 = vst [vmem:[%s137 + $0x88] sm:$0xff] %v2422
        %2741 = vst [vmem:[%s137 + $0x98] sm:$0xff] %v2525
        %2742 = vst [vmem:[%s137 + $0xa8] sm:$0xff] %v2628
        %2743 = vst [vmem:[%s137 + $0xb8] sm:$0xff] %v2731
        %s2744 = sand.u32 %s71, 1
        %s2745 = scalar_lea.sflag [#allocation3], %s2744
        %s2746 = sand.u32 %s71, 1
        %s2747 = smul.addr %s2746, 192
        %s2748 = scalar_lea.vmem [#allocation2], %s2747
        // Predicated region
        $region29: #{tpu_custom_call.1} parent=27 // pred_check
          %p2749 = pneg %p81
        $region30: #{tpu_custom_call.1} parent=27 // pred_check_branch
          %2751 = sbr.rel (%p2749) target = $region32
        $region31: #{tpu_custom_call.1} parent=27 // pred_region
          %s2752 = smul.u32 12, %s16
          %s2754 = ssub.s32 3072, 3072
          %2755 = vsyncadd %s2745, %s2754
          %s2756 = smul.addr %s2752, 2
          %s2757 = smul.addr %s2756, 128
          %s2758 = scalar_lea.hbm %s2, %s2757
          %s2759 = sshll.u32 %s2748, 4
          %s2760 = int_to_ptr.vmem [resolvable:$true] %s2759
          %2765 = dma.vmem_to_hbm [thread:$0]  %s2760, 3072, %s2758, %s2745, 256, 256, 16
        $region32: #{tpu_custom_call.1} parent=27 // pred_fallthru
          _
      $region28: #{tpu_custom_call.1} parent=5 // pred_fallthru
        _
      %p2766 = scmp.le.s32.totalorder 2, %s11
      // Predicated region
      $region33: #{tpu_custom_call.1} parent=5 // pred_check
        %p2767 = pneg %p2766
      $region34: #{tpu_custom_call.1} parent=5 // pred_check_branch
        %2769 = sbr.rel (%p2767) target = $region36
      $region35: #{tpu_custom_call.1} parent=5 // pred_region
        %s2770 = ssub.s32 %s11, 2
        // Predicated region
        $region37: #{tpu_custom_call.1} parent=35 // pred_check
          %p2771 = pneg %p87
        $region38: #{tpu_custom_call.1} parent=35 // pred_check_branch
          %2773 = sbr.rel (%p2771) target = $region40
        $region39: #{tpu_custom_call.1} parent=35 // pred_region
          %s2774 = sand.u32 %s72, 1
          %s2775 = scalar_lea.sflag [#allocation3], %s2774
          %s2776 = sand.u32 %s72, 1
          %s2777 = smul.addr %s2776, 192
          %s2778 = scalar_lea.vmem [#allocation2], %s2777
          %2779 = dma.done %s2775, 3072
        $region40: #{tpu_custom_call.1} parent=35 // pred_fallthru
          _
      $region36: #{tpu_custom_call.1} parent=5 // pred_fallthru
        _
    $region6: #{tpu_custom_call.1} parent=1 // loop_footer
      %s15 = sadd.s32 1, %s11
    $region7: #{tpu_custom_call.1} parent=1 // loop_footer_branch
      %10 = sbr.rel target = $region3
    $region8: #{tpu_custom_call.1} parent=1 // loop_exit
      _
    %2780 = vsyncpa [#allocation3], 1
    %s2781 = scalar_lea.sflag [#allocation3], 1
    %2782 = vsyncpa %s2781, 1

</llo_original>
